<compile_context>
chip_gen: v5e
topology: v5e:2x2
jax: 0.10.0
libtpu: 0.0.40
codegen_flags: <defaults>
</compile_context>

<pallas_src>
import jax
import jax.numpy as jnp
from jax.experimental import pallas as pl
from jax.experimental.pallas import tpu as pltpu

INPUT_SIZE = 16
HIDDEN = 32
SEQ = 8
BATCH = 2


def _layernorm(a, g, b, eps=1e-5):
    mu = jnp.mean(a, axis=-1, keepdims=True)
    var = jnp.mean((a - mu) ** 2, axis=-1, keepdims=True)
    return (a - mu) * jax.lax.rsqrt(var + eps) * g + b


def _leaky(a, slope=0.01):
    return jnp.where(a >= 0, a, slope * a)


def combined_net_kernel(
    x_ref, w1_ref, b1_ref, g1_ref, be1_ref,
    wx_ref, wh_ref, bgate_ref,
    w2_ref, b2_ref, g2_ref, be2_ref,
    h0c0_ref,
    y_ref, state_ref,
    z_sc):
    B = h0c0_ref.shape[0] // 2
    H = h0c0_ref.shape[1]
    S = x_ref.shape[0] // B

    # --- Linear(input_size, 32) + LayerNorm(32) + LeakyReLU (all S*B rows at once) ---
    a = jnp.dot(x_ref[...], w1_ref[...], preferred_element_type=jnp.float32) + b1_ref[...]
    a = _leaky(_layernorm(a, g1_ref[...], be1_ref[...]))

    # --- Input-side gate projection for ALL timesteps, lane-dense N=4H=128,
    #     hoisted off the serial recurrence.  Packed gate column order: [i | f | g | o],
    #     b_ih + b_hh folded into bgate, g columns pre-scaled by 2 (see sigmoid trick). ---
    xw = jnp.dot(a, wx_ref[...], preferred_element_type=jnp.float32) + bgate_ref[...]

    # --- RecurrentModelWithSkipAdd(LSTM(32, 32, 1)): out_t = x_t + lstm_out_t ---
    # TODO(synk): dropout disabled (dropout=0.0), so no Dropout branch is emitted.
    wh = wh_ref[...]            # hoisted (H, 4H) recurrent weights
    h = h0c0_ref[0:B, :]
    c = h0c0_ref[B:2 * B, :]
    for t in range(S):          # static unroll; the recurrence is inherently sequential
        # one (B,H)@(H,4H) matmul per step on the critical path
        pre = xw[t * B:(t + 1) * B, :] + jnp.dot(h, wh, preferred_element_type=jnp.float32)
        sg = jax.nn.sigmoid(pre)                 # single full-width EUP pass
        i_g = sg[:, 0 * H:1 * H]
        f_g = sg[:, 1 * H:2 * H]
        g_g = 2.0 * sg[:, 2 * H:3 * H] - 1.0     # tanh(x) = 2*sigmoid(2x)-1 (2x folded into weights)
        o_g = sg[:, 3 * H:4 * H]
        c = f_g * c + i_g * g_g
        h = o_o = o_g * jnp.tanh(c)
        # stream h only; the additive skip is applied to the whole block after the loop,
        # off the serial chain.  Store overlaps with next step's MXU/EUP latency.
        z_sc[t * B:(t + 1) * B, :] = o_o

    # merged LSTM state output: rows [0:B] = h_n, rows [B:2B] = c_n (single store)
    state_ref[...] = jnp.concatenate([h, c], axis=0)

    # --- additive skip + Linear(32, 32) + LayerNorm(32) + LeakyReLU on the full block ---
    z = a + z_sc[...]
    z = jnp.dot(z, w2_ref[...], preferred_element_type=jnp.float32) + b2_ref[...]
    z = _leaky(_layernorm(z, g2_ref[...], be2_ref[...]))
    y_ref[...] = z


def pack_params(params):
    """One-time packing (hoisted out of the per-forward path).

    Gates are packed lane-dense in torch order [i | f | g | o]; b_ih+b_hh are already
    folded; the g-gate columns/bias are pre-scaled by 2 so the kernel can use
    tanh(x) = 2*sigmoid(2x) - 1 with a single sigmoid pass per step.
    """
    wx = jnp.concatenate(
        [params['wxi'], params['wxf'], 2.0 * params['wxg'], params['wxo']], axis=1)
    wh = jnp.concatenate(
        [params['whi'], params['whf'], 2.0 * params['whg'], params['who']], axis=1)
    bg = jnp.concatenate(
        [params['bi'], params['bf'], 2.0 * params['bg'], params['bo']], axis=1)
    packed = dict(params)
    packed['wx_packed'] = wx
    packed['wh_packed'] = wh
    packed['bg_packed'] = bg
    return packed


def combined_network_recurrent(x, packed, hiddens=None):
    """x: (S, B, INPUT_SIZE) float32. `packed` from pack_params().
    Returns (y, (lstm_hidden,)) like the torch module."""
    S, B, F = x.shape
    H = packed['w1'].shape[1]
    if hiddens is None:
        h0c0 = jnp.zeros((2 * B, H), jnp.float32)
    else:
        (h0_full, c0_full), = hiddens
        h0c0 = jnp.concatenate([h0_full.reshape(B, H), c0_full.reshape(B, H)], axis=0)

    x_flat = x.reshape(S * B, F)
    args = (x_flat, packed['w1'], packed['b1'], packed['g1'], packed['be1'],
            packed['wx_packed'], packed['wh_packed'], packed['bg_packed'],
            packed['w2'], packed['b2'], packed['g2'], packed['be2'],
            h0c0)

    vmem = pl.BlockSpec(memory_space=pltpu.MemorySpace.VMEM)
    y, state = pl.pallas_call(
        combined_net_kernel,
        out_shape=(jax.ShapeDtypeStruct((S * B, H), jnp.float32),
                   jax.ShapeDtypeStruct((2 * B, H), jnp.float32)),
        in_specs=[vmem] * len(args),
        out_specs=(vmem, vmem),
        scratch_shapes=[pltpu.VMEM((S * B, H), jnp.float32)],
    )(*args)

    y = y.reshape(S, B, H)
    # torch LSTM hidden convention: (num_layers=1, B, H)
    hn = state[0:B].reshape(1, B, H)
    cn = state[B:2 * B].reshape(1, B, H)
    return y, ((hn, cn),)


def reference(x, params, hiddens=None):
    """Pure-JAX reference mirroring the torch forward pass (unpacked gates)."""
    S, B, F = x.shape
    H = params['w1'].shape[1]
    a = x @ params['w1'] + params['b1']
    a = _leaky(_layernorm(a, params['g1'], params['be1']))
    if hiddens is None:
        h = jnp.zeros((B, H), jnp.float32)
        c = jnp.zeros((B, H), jnp.float32)
    else:
        (h_full, c_full), = hiddens
        h, c = h_full[0], c_full[0]
    outs = []
    for t in range(S):
        xt = a[t]
        i = jax.nn.sigmoid(xt @ params['wxi'] + h @ params['whi'] + params['bi'])
        f = jax.nn.sigmoid(xt @ params['wxf'] + h @ params['whf'] + params['bf'])
        g = jnp.tanh(xt @ params['wxg'] + h @ params['whg'] + params['bg'])
        o = jax.nn.sigmoid(xt @ params['wxo'] + h @ params['who'] + params['bo'])
        c = f * c + i * g
        h = o * jnp.tanh(c)
        outs.append(xt + h)
    z = jnp.stack(outs, 0)
    z = z @ params['w2'] + params['b2']
    z = _leaky(_layernorm(z, params['g2'], params['be2']))
    return z, ((h[None], c[None]),)


def init_params(key):
    keys = jax.random.split(key, 8)

    def w(k, shape, scale=0.2):
        return scale * jax.random.normal(k, shape, jnp.float32)

    p = {}
    p['w1'] = w(keys[0], (INPUT_SIZE, HIDDEN))
    p['b1'] = w(keys[1], (1, HIDDEN))
    p['g1'] = jnp.ones((1, HIDDEN), jnp.float32)    # LayerNorm affine
    p['be1'] = jnp.zeros((1, HIDDEN), jnp.float32)
    gate_names = ['i', 'f', 'g', 'o']               # torch gate order i,f,g,o
    for n, k in zip(gate_names, jax.random.split(keys[2], 4)):
        p['wx' + n] = w(k, (HIDDEN, HIDDEN))        # W_ih gate block (transposed)
    for n, k in zip(gate_names, jax.random.split(keys[3], 4)):
        p['wh' + n] = w(k, (HIDDEN, HIDDEN))        # W_hh gate block (transposed)
    for n, k in zip(gate_names, jax.random.split(keys[4], 4)):
        p['b' + n] = w(k, (1, HIDDEN))              # b_ih + b_hh folded together
    p['w2'] = w(keys[5], (HIDDEN, HIDDEN))
    p['b2'] = w(keys[6], (1, HIDDEN))
    p['g2'] = jnp.ones((1, HIDDEN), jnp.float32)
    p['be2'] = jnp.zeros((1, HIDDEN), jnp.float32)
    return p


if __name__ == "__main__":
    key = jax.random.PRNGKey(0)
    kx, kp = jax.random.split(key)
    x = jax.random.normal(kx, (SEQ, BATCH, INPUT_SIZE), jnp.float32)
    params = init_params(kp)
    packed = pack_params(params)            # one-time packing, hoisted off the forward path
    jax.block_until_ready(packed)

    y, hiddens = combined_network_recurrent(x, packed, hiddens=None)
    jax.block_until_ready((y, hiddens))

    y_ref, hid_ref = reference(x, params, hiddens=None)
    assert jnp.allclose(y, y_ref, atol=1e-4, rtol=1e-4), float(jnp.max(jnp.abs(y - y_ref)))
    assert jnp.allclose(hiddens[0][0], hid_ref[0][0], atol=1e-4, rtol=1e-4)
    assert jnp.allclose(hiddens[0][1], hid_ref[0][1], atol=1e-4, rtol=1e-4)
    print("KERNEL_OK")
</pallas_src>

<mosaic_0001>
module attributes {stable_mosaic.version = 11 : i64} {
  func.func @combined_net_kernel(%arg0: memref<16x16xf32, #tpu.memory_space<vmem>>, %arg1: memref<16x32xf32, #tpu.memory_space<vmem>>, %arg2: memref<1x32xf32, #tpu.memory_space<vmem>>, %arg3: memref<1x32xf32, #tpu.memory_space<vmem>>, %arg4: memref<1x32xf32, #tpu.memory_space<vmem>>, %arg5: memref<32x128xf32, #tpu.memory_space<vmem>>, %arg6: memref<32x128xf32, #tpu.memory_space<vmem>>, %arg7: memref<1x128xf32, #tpu.memory_space<vmem>>, %arg8: memref<32x32xf32, #tpu.memory_space<vmem>>, %arg9: memref<1x32xf32, #tpu.memory_space<vmem>>, %arg10: memref<1x32xf32, #tpu.memory_space<vmem>>, %arg11: memref<1x32xf32, #tpu.memory_space<vmem>>, %arg12: memref<4x32xf32, #tpu.memory_space<vmem>>, %arg13: memref<16x32xf32, #tpu.memory_space<vmem>>, %arg14: memref<4x32xf32, #tpu.memory_space<vmem>>, %arg15: memref<16x32xf32, #tpu.memory_space<vmem>>) attributes {dimension_semantics = [], scalar_prefetch = 0 : i64, scratch_operands = 1 : i64, tpu.core_type = #tpu.core_type<tc>} {
    %c0 = arith.constant 0 : index
    %c0_0 = arith.constant 0 : index
    %0 = vector.load %arg0[%c0, %c0_0] : memref<16x16xf32, #tpu.memory_space<vmem>>, vector<16x16xf32>
    %c0_1 = arith.constant 0 : index
    %c0_2 = arith.constant 0 : index
    %1 = vector.load %arg1[%c0_1, %c0_2] : memref<16x32xf32, #tpu.memory_space<vmem>>, vector<16x32xf32>
    %cst = arith.constant dense<0.000000e+00> : vector<16x32xf32>
    %2 = tpu.matmul %0, %1, %cst {dimension_numbers = #tpu.dot_dimension_numbers<[1], [0], [0], [1], [0, 0, 1, 1], [], []>} : vector<16x16xf32>, vector<16x32xf32>, vector<16x32xf32> -> vector<16x32xf32>
    %c0_3 = arith.constant 0 : index
    %c0_4 = arith.constant 0 : index
    %3 = vector.load %arg2[%c0_3, %c0_4] : memref<1x32xf32, #tpu.memory_space<vmem>>, vector<1x32xf32>
    %4 = vector.broadcast %3 : vector<1x32xf32> to vector<16x32xf32>
    %5 = arith.addf %2, %4 : vector<16x32xf32>
    %c0_5 = arith.constant 0 : index
    %c0_6 = arith.constant 0 : index
    %6 = vector.load %arg3[%c0_5, %c0_6] : memref<1x32xf32, #tpu.memory_space<vmem>>, vector<1x32xf32>
    %c0_7 = arith.constant 0 : index
    %c0_8 = arith.constant 0 : index
    %7 = vector.load %arg4[%c0_7, %c0_8] : memref<1x32xf32, #tpu.memory_space<vmem>>, vector<1x32xf32>
    %cst_9 = arith.constant dense<0.000000e+00> : vector<16xf32>
    %8 = vector.multi_reduction <add>, %5, %cst_9 [1] : vector<16x32xf32> to vector<16xf32>
    %9 = vector.shape_cast %8 : vector<16xf32> to vector<16x1xf32>
    %cst_10 = arith.constant 3.200000e+01 : f32
    %10 = vector.broadcast %cst_10 : f32 to vector<16x1xf32>
    %11 = arith.divf %9, %10 : vector<16x1xf32>
    %12 = vector.broadcast %11 : vector<16x1xf32> to vector<16x32xf32>
    %13 = arith.subf %5, %12 : vector<16x32xf32>
    %14 = arith.mulf %13, %13 : vector<16x32xf32>
    %cst_11 = arith.constant dense<0.000000e+00> : vector<16xf32>
    %15 = vector.multi_reduction <add>, %14, %cst_11 [1] : vector<16x32xf32> to vector<16xf32>
    %16 = vector.shape_cast %15 : vector<16xf32> to vector<16x1xf32>
    %cst_12 = arith.constant 3.200000e+01 : f32
    %17 = vector.broadcast %cst_12 : f32 to vector<16x1xf32>
    %18 = arith.divf %16, %17 : vector<16x1xf32>
    %19 = vector.broadcast %11 : vector<16x1xf32> to vector<16x32xf32>
    %20 = arith.subf %5, %19 : vector<16x32xf32>
    %cst_13 = arith.constant 9.99999974E-6 : f32
    %21 = vector.broadcast %cst_13 : f32 to vector<16x1xf32>
    %22 = arith.addf %18, %21 : vector<16x1xf32>
    %23 = math.rsqrt %22 : vector<16x1xf32>
    %24 = vector.broadcast %23 : vector<16x1xf32> to vector<16x32xf32>
    %25 = arith.mulf %20, %24 : vector<16x32xf32>
    %26 = vector.broadcast %6 : vector<1x32xf32> to vector<16x32xf32>
    %27 = arith.mulf %25, %26 : vector<16x32xf32>
    %28 = vector.broadcast %7 : vector<1x32xf32> to vector<16x32xf32>
    %29 = arith.addf %27, %28 : vector<16x32xf32>
    %cst_14 = arith.constant 0.000000e+00 : f32
    %30 = vector.broadcast %cst_14 : f32 to vector<16x32xf32>
    %31 = arith.cmpf oge, %29, %30 : vector<16x32xf32>
    %cst_15 = arith.constant 0.00999999977 : f32
    %32 = vector.broadcast %cst_15 : f32 to vector<16x32xf32>
    %33 = arith.mulf %32, %29 : vector<16x32xf32>
    %34 = arith.select %31, %29, %33 : vector<16x32xi1>, vector<16x32xf32>
    %c0_16 = arith.constant 0 : index
    %c0_17 = arith.constant 0 : index
    %35 = vector.load %arg5[%c0_16, %c0_17] : memref<32x128xf32, #tpu.memory_space<vmem>>, vector<32x128xf32>
    %cst_18 = arith.constant dense<0.000000e+00> : vector<16x128xf32>
    %36 = tpu.matmul %34, %35, %cst_18 {dimension_numbers = #tpu.dot_dimension_numbers<[1], [0], [0], [1], [0, 0, 1, 1], [], []>} : vector<16x32xf32>, vector<32x128xf32>, vector<16x128xf32> -> vector<16x128xf32>
    %c0_19 = arith.constant 0 : index
    %c0_20 = arith.constant 0 : index
    %37 = vector.load %arg7[%c0_19, %c0_20] : memref<1x128xf32, #tpu.memory_space<vmem>>, vector<1x128xf32>
    %38 = vector.broadcast %37 : vector<1x128xf32> to vector<16x128xf32>
    %39 = arith.addf %36, %38 : vector<16x128xf32>
    %c0_21 = arith.constant 0 : index
    %c0_22 = arith.constant 0 : index
    %40 = vector.load %arg6[%c0_21, %c0_22] : memref<32x128xf32, #tpu.memory_space<vmem>>, vector<32x128xf32>
    %c0_23 = arith.constant 0 : index
    %c0_24 = arith.constant 0 : index
    %41 = vector.load %arg12[%c0_23, %c0_24] : memref<4x32xf32, #tpu.memory_space<vmem>>, vector<2x32xf32>
    %c2 = arith.constant 2 : index
    %c0_25 = arith.constant 0 : index
    %42 = vector.load %arg12[%c2, %c0_25] : memref<4x32xf32, #tpu.memory_space<vmem>>, vector<2x32xf32>
    %43 = vector.extract_strided_slice %39 {offsets = [0, 0], sizes = [2, 128], strides = [1, 1]} : vector<16x128xf32> to vector<2x128xf32>
    %cst_26 = arith.constant dense<0.000000e+00> : vector<2x128xf32>
    %44 = tpu.matmul %41, %40, %cst_26 {dimension_numbers = #tpu.dot_dimension_numbers<[1], [0], [0], [1], [0, 0, 1, 1], [], []>} : vector<2x32xf32>, vector<32x128xf32>, vector<2x128xf32> -> vector<2x128xf32>
    %45 = arith.addf %43, %44 : vector<2x128xf32>
    %46 = arith.negf %45 : vector<2x128xf32>
    %47 = math.exp %46 : vector<2x128xf32>
    %cst_27 = arith.constant 1.000000e+00 : f32
    %48 = vector.broadcast %cst_27 : f32 to vector<2x128xf32>
    %49 = arith.addf %48, %47 : vector<2x128xf32>
    %50 = arith.divf %48, %49 : vector<2x128xf32>
    %51 = vector.extract_strided_slice %50 {offsets = [0, 0], sizes = [2, 32], strides = [1, 1]} : vector<2x128xf32> to vector<2x32xf32>
    %52 = vector.extract_strided_slice %50 {offsets = [0, 32], sizes = [2, 32], strides = [1, 1]} : vector<2x128xf32> to vector<2x32xf32>
    %53 = vector.extract_strided_slice %50 {offsets = [0, 64], sizes = [2, 32], strides = [1, 1]} : vector<2x128xf32> to vector<2x32xf32>
    %cst_28 = arith.constant 2.000000e+00 : f32
    %54 = vector.broadcast %cst_28 : f32 to vector<2x32xf32>
    %55 = arith.mulf %54, %53 : vector<2x32xf32>
    %cst_29 = arith.constant 1.000000e+00 : f32
    %56 = vector.broadcast %cst_29 : f32 to vector<2x32xf32>
    %57 = arith.subf %55, %56 : vector<2x32xf32>
    %58 = vector.extract_strided_slice %50 {offsets = [0, 96], sizes = [2, 32], strides = [1, 1]} : vector<2x128xf32> to vector<2x32xf32>
    %59 = arith.mulf %52, %42 : vector<2x32xf32>
    %60 = arith.mulf %51, %57 : vector<2x32xf32>
    %61 = arith.addf %59, %60 : vector<2x32xf32>
    %62 = math.tanh %61 : vector<2x32xf32>
    %63 = arith.mulf %58, %62 : vector<2x32xf32>
    %c0_30 = arith.constant 0 : index
    %c0_31 = arith.constant 0 : index
    %64 = vector.load %arg15[%c0_30, %c0_31] : memref<16x32xf32, #tpu.memory_space<vmem>>, vector<2x32xf32>
    tpu.vector_store %arg15[%c0_30, %c0_31], %63 {strides = array<i32>} : memref<16x32xf32, #tpu.memory_space<vmem>>, vector<2x32xf32>,
    %65 = vector.extract_strided_slice %39 {offsets = [2, 0], sizes = [2, 128], strides = [1, 1]} : vector<16x128xf32> to vector<2x128xf32>
    %cst_32 = arith.constant dense<0.000000e+00> : vector<2x128xf32>
    %66 = tpu.matmul %63, %40, %cst_32 {dimension_numbers = #tpu.dot_dimension_numbers<[1], [0], [0], [1], [0, 0, 1, 1], [], []>} : vector<2x32xf32>, vector<32x128xf32>, vector<2x128xf32> -> vector<2x128xf32>
    %67 = arith.addf %65, %66 : vector<2x128xf32>
    %68 = arith.negf %67 : vector<2x128xf32>
    %69 = math.exp %68 : vector<2x128xf32>
    %cst_33 = arith.constant 1.000000e+00 : f32
    %70 = vector.broadcast %cst_33 : f32 to vector<2x128xf32>
    %71 = arith.addf %70, %69 : vector<2x128xf32>
    %72 = arith.divf %70, %71 : vector<2x128xf32>
    %73 = vector.extract_strided_slice %72 {offsets = [0, 0], sizes = [2, 32], strides = [1, 1]} : vector<2x128xf32> to vector<2x32xf32>
    %74 = vector.extract_strided_slice %72 {offsets = [0, 32], sizes = [2, 32], strides = [1, 1]} : vector<2x128xf32> to vector<2x32xf32>
    %75 = vector.extract_strided_slice %72 {offsets = [0, 64], sizes = [2, 32], strides = [1, 1]} : vector<2x128xf32> to vector<2x32xf32>
    %cst_34 = arith.constant 2.000000e+00 : f32
    %76 = vector.broadcast %cst_34 : f32 to vector<2x32xf32>
    %77 = arith.mulf %76, %75 : vector<2x32xf32>
    %cst_35 = arith.constant 1.000000e+00 : f32
    %78 = vector.broadcast %cst_35 : f32 to vector<2x32xf32>
    %79 = arith.subf %77, %78 : vector<2x32xf32>
    %80 = vector.extract_strided_slice %72 {offsets = [0, 96], sizes = [2, 32], strides = [1, 1]} : vector<2x128xf32> to vector<2x32xf32>
    %81 = arith.mulf %74, %61 : vector<2x32xf32>
    %82 = arith.mulf %73, %79 : vector<2x32xf32>
    %83 = arith.addf %81, %82 : vector<2x32xf32>
    %84 = math.tanh %83 : vector<2x32xf32>
    %85 = arith.mulf %80, %84 : vector<2x32xf32>
    %c2_36 = arith.constant 2 : index
    %c0_37 = arith.constant 0 : index
    %86 = vector.load %arg15[%c2_36, %c0_37] : memref<16x32xf32, #tpu.memory_space<vmem>>, vector<2x32xf32>
    tpu.vector_store %arg15[%c2_36, %c0_37], %85 {strides = array<i32>} : memref<16x32xf32, #tpu.memory_space<vmem>>, vector<2x32xf32>,
    %87 = vector.extract_strided_slice %39 {offsets = [4, 0], sizes = [2, 128], strides = [1, 1]} : vector<16x128xf32> to vector<2x128xf32>
    %cst_38 = arith.constant dense<0.000000e+00> : vector<2x128xf32>
    %88 = tpu.matmul %85, %40, %cst_38 {dimension_numbers = #tpu.dot_dimension_numbers<[1], [0], [0], [1], [0, 0, 1, 1], [], []>} : vector<2x32xf32>, vector<32x128xf32>, vector<2x128xf32> -> vector<2x128xf32>
    %89 = arith.addf %87, %88 : vector<2x128xf32>
    %90 = arith.negf %89 : vector<2x128xf32>
    %91 = math.exp %90 : vector<2x128xf32>
    %cst_39 = arith.constant 1.000000e+00 : f32
    %92 = vector.broadcast %cst_39 : f32 to vector<2x128xf32>
    %93 = arith.addf %92, %91 : vector<2x128xf32>
    %94 = arith.divf %92, %93 : vector<2x128xf32>
    %95 = vector.extract_strided_slice %94 {offsets = [0, 0], sizes = [2, 32], strides = [1, 1]} : vector<2x128xf32> to vector<2x32xf32>
    %96 = vector.extract_strided_slice %94 {offsets = [0, 32], sizes = [2, 32], strides = [1, 1]} : vector<2x128xf32> to vector<2x32xf32>
    %97 = vector.extract_strided_slice %94 {offsets = [0, 64], sizes = [2, 32], strides = [1, 1]} : vector<2x128xf32> to vector<2x32xf32>
    %cst_40 = arith.constant 2.000000e+00 : f32
    %98 = vector.broadcast %cst_40 : f32 to vector<2x32xf32>
    %99 = arith.mulf %98, %97 : vector<2x32xf32>
    %cst_41 = arith.constant 1.000000e+00 : f32
    %100 = vector.broadcast %cst_41 : f32 to vector<2x32xf32>
    %101 = arith.subf %99, %100 : vector<2x32xf32>
    %102 = vector.extract_strided_slice %94 {offsets = [0, 96], sizes = [2, 32], strides = [1, 1]} : vector<2x128xf32> to vector<2x32xf32>
    %103 = arith.mulf %96, %83 : vector<2x32xf32>
    %104 = arith.mulf %95, %101 : vector<2x32xf32>
    %105 = arith.addf %103, %104 : vector<2x32xf32>
    %106 = math.tanh %105 : vector<2x32xf32>
    %107 = arith.mulf %102, %106 : vector<2x32xf32>
    %c4 = arith.constant 4 : index
    %c0_42 = arith.constant 0 : index
    %108 = vector.load %arg15[%c4, %c0_42] : memref<16x32xf32, #tpu.memory_space<vmem>>, vector<2x32xf32>
    tpu.vector_store %arg15[%c4, %c0_42], %107 {strides = array<i32>} : memref<16x32xf32, #tpu.memory_space<vmem>>, vector<2x32xf32>,
    %109 = vector.extract_strided_slice %39 {offsets = [6, 0], sizes = [2, 128], strides = [1, 1]} : vector<16x128xf32> to vector<2x128xf32>
    %cst_43 = arith.constant dense<0.000000e+00> : vector<2x128xf32>
    %110 = tpu.matmul %107, %40, %cst_43 {dimension_numbers = #tpu.dot_dimension_numbers<[1], [0], [0], [1], [0, 0, 1, 1], [], []>} : vector<2x32xf32>, vector<32x128xf32>, vector<2x128xf32> -> vector<2x128xf32>
    %111 = arith.addf %109, %110 : vector<2x128xf32>
    %112 = arith.negf %111 : vector<2x128xf32>
    %113 = math.exp %112 : vector<2x128xf32>
    %cst_44 = arith.constant 1.000000e+00 : f32
    %114 = vector.broadcast %cst_44 : f32 to vector<2x128xf32>
    %115 = arith.addf %114, %113 : vector<2x128xf32>
    %116 = arith.divf %114, %115 : vector<2x128xf32>
    %117 = vector.extract_strided_slice %116 {offsets = [0, 0], sizes = [2, 32], strides = [1, 1]} : vector<2x128xf32> to vector<2x32xf32>
    %118 = vector.extract_strided_slice %116 {offsets = [0, 32], sizes = [2, 32], strides = [1, 1]} : vector<2x128xf32> to vector<2x32xf32>
    %119 = vector.extract_strided_slice %116 {offsets = [0, 64], sizes = [2, 32], strides = [1, 1]} : vector<2x128xf32> to vector<2x32xf32>
    %cst_45 = arith.constant 2.000000e+00 : f32
    %120 = vector.broadcast %cst_45 : f32 to vector<2x32xf32>
    %121 = arith.mulf %120, %119 : vector<2x32xf32>
    %cst_46 = arith.constant 1.000000e+00 : f32
    %122 = vector.broadcast %cst_46 : f32 to vector<2x32xf32>
    %123 = arith.subf %121, %122 : vector<2x32xf32>
    %124 = vector.extract_strided_slice %116 {offsets = [0, 96], sizes = [2, 32], strides = [1, 1]} : vector<2x128xf32> to vector<2x32xf32>
    %125 = arith.mulf %118, %105 : vector<2x32xf32>
    %126 = arith.mulf %117, %123 : vector<2x32xf32>
    %127 = arith.addf %125, %126 : vector<2x32xf32>
    %128 = math.tanh %127 : vector<2x32xf32>
    %129 = arith.mulf %124, %128 : vector<2x32xf32>
    %c6 = arith.constant 6 : index
    %c0_47 = arith.constant 0 : index
    %130 = vector.load %arg15[%c6, %c0_47] : memref<16x32xf32, #tpu.memory_space<vmem>>, vector<2x32xf32>
    tpu.vector_store %arg15[%c6, %c0_47], %129 {strides = array<i32>} : memref<16x32xf32, #tpu.memory_space<vmem>>, vector<2x32xf32>,
    %131 = vector.extract_strided_slice %39 {offsets = [8, 0], sizes = [2, 128], strides = [1, 1]} : vector<16x128xf32> to vector<2x128xf32>
    %cst_48 = arith.constant dense<0.000000e+00> : vector<2x128xf32>
    %132 = tpu.matmul %129, %40, %cst_48 {dimension_numbers = #tpu.dot_dimension_numbers<[1], [0], [0], [1], [0, 0, 1, 1], [], []>} : vector<2x32xf32>, vector<32x128xf32>, vector<2x128xf32> -> vector<2x128xf32>
    %133 = arith.addf %131, %132 : vector<2x128xf32>
    %134 = arith.negf %133 : vector<2x128xf32>
    %135 = math.exp %134 : vector<2x128xf32>
    %cst_49 = arith.constant 1.000000e+00 : f32
    %136 = vector.broadcast %cst_49 : f32 to vector<2x128xf32>
    %137 = arith.addf %136, %135 : vector<2x128xf32>
    %138 = arith.divf %136, %137 : vector<2x128xf32>
    %139 = vector.extract_strided_slice %138 {offsets = [0, 0], sizes = [2, 32], strides = [1, 1]} : vector<2x128xf32> to vector<2x32xf32>
    %140 = vector.extract_strided_slice %138 {offsets = [0, 32], sizes = [2, 32], strides = [1, 1]} : vector<2x128xf32> to vector<2x32xf32>
    %141 = vector.extract_strided_slice %138 {offsets = [0, 64], sizes = [2, 32], strides = [1, 1]} : vector<2x128xf32> to vector<2x32xf32>
    %cst_50 = arith.constant 2.000000e+00 : f32
    %142 = vector.broadcast %cst_50 : f32 to vector<2x32xf32>
    %143 = arith.mulf %142, %141 : vector<2x32xf32>
    %cst_51 = arith.constant 1.000000e+00 : f32
    %144 = vector.broadcast %cst_51 : f32 to vector<2x32xf32>
    %145 = arith.subf %143, %144 : vector<2x32xf32>
    %146 = vector.extract_strided_slice %138 {offsets = [0, 96], sizes = [2, 32], strides = [1, 1]} : vector<2x128xf32> to vector<2x32xf32>
    %147 = arith.mulf %140, %127 : vector<2x32xf32>
    %148 = arith.mulf %139, %145 : vector<2x32xf32>
    %149 = arith.addf %147, %148 : vector<2x32xf32>
    %150 = math.tanh %149 : vector<2x32xf32>
    %151 = arith.mulf %146, %150 : vector<2x32xf32>
    %c8 = arith.constant 8 : index
    %c0_52 = arith.constant 0 : index
    %152 = vector.load %arg15[%c8, %c0_52] : memref<16x32xf32, #tpu.memory_space<vmem>>, vector<2x32xf32>
    tpu.vector_store %arg15[%c8, %c0_52], %151 {strides = array<i32>} : memref<16x32xf32, #tpu.memory_space<vmem>>, vector<2x32xf32>,
    %153 = vector.extract_strided_slice %39 {offsets = [10, 0], sizes = [2, 128], strides = [1, 1]} : vector<16x128xf32> to vector<2x128xf32>
    %cst_53 = arith.constant dense<0.000000e+00> : vector<2x128xf32>
    %154 = tpu.matmul %151, %40, %cst_53 {dimension_numbers = #tpu.dot_dimension_numbers<[1], [0], [0], [1], [0, 0, 1, 1], [], []>} : vector<2x32xf32>, vector<32x128xf32>, vector<2x128xf32> -> vector<2x128xf32>
    %155 = arith.addf %153, %154 : vector<2x128xf32>
    %156 = arith.negf %155 : vector<2x128xf32>
    %157 = math.exp %156 : vector<2x128xf32>
    %cst_54 = arith.constant 1.000000e+00 : f32
    %158 = vector.broadcast %cst_54 : f32 to vector<2x128xf32>
    %159 = arith.addf %158, %157 : vector<2x128xf32>
    %160 = arith.divf %158, %159 : vector<2x128xf32>
    %161 = vector.extract_strided_slice %160 {offsets = [0, 0], sizes = [2, 32], strides = [1, 1]} : vector<2x128xf32> to vector<2x32xf32>
    %162 = vector.extract_strided_slice %160 {offsets = [0, 32], sizes = [2, 32], strides = [1, 1]} : vector<2x128xf32> to vector<2x32xf32>
    %163 = vector.extract_strided_slice %160 {offsets = [0, 64], sizes = [2, 32], strides = [1, 1]} : vector<2x128xf32> to vector<2x32xf32>
    %cst_55 = arith.constant 2.000000e+00 : f32
    %164 = vector.broadcast %cst_55 : f32 to vector<2x32xf32>
    %165 = arith.mulf %164, %163 : vector<2x32xf32>
    %cst_56 = arith.constant 1.000000e+00 : f32
    %166 = vector.broadcast %cst_56 : f32 to vector<2x32xf32>
    %167 = arith.subf %165, %166 : vector<2x32xf32>
    %168 = vector.extract_strided_slice %160 {offsets = [0, 96], sizes = [2, 32], strides = [1, 1]} : vector<2x128xf32> to vector<2x32xf32>
    %169 = arith.mulf %162, %149 : vector<2x32xf32>
    %170 = arith.mulf %161, %167 : vector<2x32xf32>
    %171 = arith.addf %169, %170 : vector<2x32xf32>
    %172 = math.tanh %171 : vector<2x32xf32>
    %173 = arith.mulf %168, %172 : vector<2x32xf32>
    %c10 = arith.constant 10 : index
    %c0_57 = arith.constant 0 : index
    %174 = vector.load %arg15[%c10, %c0_57] : memref<16x32xf32, #tpu.memory_space<vmem>>, vector<2x32xf32>
    tpu.vector_store %arg15[%c10, %c0_57], %173 {strides = array<i32>} : memref<16x32xf32, #tpu.memory_space<vmem>>, vector<2x32xf32>,
    %175 = vector.extract_strided_slice %39 {offsets = [12, 0], sizes = [2, 128], strides = [1, 1]} : vector<16x128xf32> to vector<2x128xf32>
    %cst_58 = arith.constant dense<0.000000e+00> : vector<2x128xf32>
    %176 = tpu.matmul %173, %40, %cst_58 {dimension_numbers = #tpu.dot_dimension_numbers<[1], [0], [0], [1], [0, 0, 1, 1], [], []>} : vector<2x32xf32>, vector<32x128xf32>, vector<2x128xf32> -> vector<2x128xf32>
    %177 = arith.addf %175, %176 : vector<2x128xf32>
    %178 = arith.negf %177 : vector<2x128xf32>
    %179 = math.exp %178 : vector<2x128xf32>
    %cst_59 = arith.constant 1.000000e+00 : f32
    %180 = vector.broadcast %cst_59 : f32 to vector<2x128xf32>
    %181 = arith.addf %180, %179 : vector<2x128xf32>
    %182 = arith.divf %180, %181 : vector<2x128xf32>
    %183 = vector.extract_strided_slice %182 {offsets = [0, 0], sizes = [2, 32], strides = [1, 1]} : vector<2x128xf32> to vector<2x32xf32>
    %184 = vector.extract_strided_slice %182 {offsets = [0, 32], sizes = [2, 32], strides = [1, 1]} : vector<2x128xf32> to vector<2x32xf32>
    %185 = vector.extract_strided_slice %182 {offsets = [0, 64], sizes = [2, 32], strides = [1, 1]} : vector<2x128xf32> to vector<2x32xf32>
    %cst_60 = arith.constant 2.000000e+00 : f32
    %186 = vector.broadcast %cst_60 : f32 to vector<2x32xf32>
    %187 = arith.mulf %186, %185 : vector<2x32xf32>
    %cst_61 = arith.constant 1.000000e+00 : f32
    %188 = vector.broadcast %cst_61 : f32 to vector<2x32xf32>
    %189 = arith.subf %187, %188 : vector<2x32xf32>
    %190 = vector.extract_strided_slice %182 {offsets = [0, 96], sizes = [2, 32], strides = [1, 1]} : vector<2x128xf32> to vector<2x32xf32>
    %191 = arith.mulf %184, %171 : vector<2x32xf32>
    %192 = arith.mulf %183, %189 : vector<2x32xf32>
    %193 = arith.addf %191, %192 : vector<2x32xf32>
    %194 = math.tanh %193 : vector<2x32xf32>
    %195 = arith.mulf %190, %194 : vector<2x32xf32>
    %c12 = arith.constant 12 : index
    %c0_62 = arith.constant 0 : index
    %196 = vector.load %arg15[%c12, %c0_62] : memref<16x32xf32, #tpu.memory_space<vmem>>, vector<2x32xf32>
    tpu.vector_store %arg15[%c12, %c0_62], %195 {strides = array<i32>} : memref<16x32xf32, #tpu.memory_space<vmem>>, vector<2x32xf32>,
    %197 = vector.extract_strided_slice %39 {offsets = [14, 0], sizes = [2, 128], strides = [1, 1]} : vector<16x128xf32> to vector<2x128xf32>
    %cst_63 = arith.constant dense<0.000000e+00> : vector<2x128xf32>
    %198 = tpu.matmul %195, %40, %cst_63 {dimension_numbers = #tpu.dot_dimension_numbers<[1], [0], [0], [1], [0, 0, 1, 1], [], []>} : vector<2x32xf32>, vector<32x128xf32>, vector<2x128xf32> -> vector<2x128xf32>
    %199 = arith.addf %197, %198 : vector<2x128xf32>
    %200 = arith.negf %199 : vector<2x128xf32>
    %201 = math.exp %200 : vector<2x128xf32>
    %cst_64 = arith.constant 1.000000e+00 : f32
    %202 = vector.broadcast %cst_64 : f32 to vector<2x128xf32>
    %203 = arith.addf %202, %201 : vector<2x128xf32>
    %204 = arith.divf %202, %203 : vector<2x128xf32>
    %205 = vector.extract_strided_slice %204 {offsets = [0, 0], sizes = [2, 32], strides = [1, 1]} : vector<2x128xf32> to vector<2x32xf32>
    %206 = vector.extract_strided_slice %204 {offsets = [0, 32], sizes = [2, 32], strides = [1, 1]} : vector<2x128xf32> to vector<2x32xf32>
    %207 = vector.extract_strided_slice %204 {offsets = [0, 64], sizes = [2, 32], strides = [1, 1]} : vector<2x128xf32> to vector<2x32xf32>
    %cst_65 = arith.constant 2.000000e+00 : f32
    %208 = vector.broadcast %cst_65 : f32 to vector<2x32xf32>
    %209 = arith.mulf %208, %207 : vector<2x32xf32>
    %cst_66 = arith.constant 1.000000e+00 : f32
    %210 = vector.broadcast %cst_66 : f32 to vector<2x32xf32>
    %211 = arith.subf %209, %210 : vector<2x32xf32>
    %212 = vector.extract_strided_slice %204 {offsets = [0, 96], sizes = [2, 32], strides = [1, 1]} : vector<2x128xf32> to vector<2x32xf32>
    %213 = arith.mulf %206, %193 : vector<2x32xf32>
    %214 = arith.mulf %205, %211 : vector<2x32xf32>
    %215 = arith.addf %213, %214 : vector<2x32xf32>
    %216 = math.tanh %215 : vector<2x32xf32>
    %217 = arith.mulf %212, %216 : vector<2x32xf32>
    %c14 = arith.constant 14 : index
    %c0_67 = arith.constant 0 : index
    %218 = vector.load %arg15[%c14, %c0_67] : memref<16x32xf32, #tpu.memory_space<vmem>>, vector<2x32xf32>
    tpu.vector_store %arg15[%c14, %c0_67], %217 {strides = array<i32>} : memref<16x32xf32, #tpu.memory_space<vmem>>, vector<2x32xf32>,
    %219 = tpu.concatenate %217, %215 in 0 : vector<2x32xf32>, vector<2x32xf32> -> vector<4x32xf32>
    %c0_68 = arith.constant 0 : index
    %c0_69 = arith.constant 0 : index
    %220 = vector.load %arg14[%c0_68, %c0_69] : memref<4x32xf32, #tpu.memory_space<vmem>>, vector<4x32xf32>
    tpu.vector_store %arg14[%c0_68, %c0_69], %219 {strides = array<i32>} : memref<4x32xf32, #tpu.memory_space<vmem>>, vector<4x32xf32>,
    %c0_70 = arith.constant 0 : index
    %c0_71 = arith.constant 0 : index
    %221 = vector.load %arg15[%c0_70, %c0_71] : memref<16x32xf32, #tpu.memory_space<vmem>>, vector<16x32xf32>
    %222 = arith.addf %34, %221 : vector<16x32xf32>
    %c0_72 = arith.constant 0 : index
    %c0_73 = arith.constant 0 : index
    %223 = vector.load %arg8[%c0_72, %c0_73] : memref<32x32xf32, #tpu.memory_space<vmem>>, vector<32x32xf32>
    %cst_74 = arith.constant dense<0.000000e+00> : vector<16x32xf32>
    %224 = tpu.matmul %222, %223, %cst_74 {dimension_numbers = #tpu.dot_dimension_numbers<[1], [0], [0], [1], [0, 0, 1, 1], [], []>} : vector<16x32xf32>, vector<32x32xf32>, vector<16x32xf32> -> vector<16x32xf32>
    %c0_75 = arith.constant 0 : index
    %c0_76 = arith.constant 0 : index
    %225 = vector.load %arg9[%c0_75, %c0_76] : memref<1x32xf32, #tpu.memory_space<vmem>>, vector<1x32xf32>
    %226 = vector.broadcast %225 : vector<1x32xf32> to vector<16x32xf32>
    %227 = arith.addf %224, %226 : vector<16x32xf32>
    %c0_77 = arith.constant 0 : index
    %c0_78 = arith.constant 0 : index
    %228 = vector.load %arg10[%c0_77, %c0_78] : memref<1x32xf32, #tpu.memory_space<vmem>>, vector<1x32xf32>
    %c0_79 = arith.constant 0 : index
    %c0_80 = arith.constant 0 : index
    %229 = vector.load %arg11[%c0_79, %c0_80] : memref<1x32xf32, #tpu.memory_space<vmem>>, vector<1x32xf32>
    %cst_81 = arith.constant dense<0.000000e+00> : vector<16xf32>
    %230 = vector.multi_reduction <add>, %227, %cst_81 [1] : vector<16x32xf32> to vector<16xf32>
    %231 = vector.shape_cast %230 : vector<16xf32> to vector<16x1xf32>
    %cst_82 = arith.constant 3.200000e+01 : f32
    %232 = vector.broadcast %cst_82 : f32 to vector<16x1xf32>
    %233 = arith.divf %231, %232 : vector<16x1xf32>
    %234 = vector.broadcast %233 : vector<16x1xf32> to vector<16x32xf32>
    %235 = arith.subf %227, %234 : vector<16x32xf32>
    %236 = arith.mulf %235, %235 : vector<16x32xf32>
    %cst_83 = arith.constant dense<0.000000e+00> : vector<16xf32>
    %237 = vector.multi_reduction <add>, %236, %cst_83 [1] : vector<16x32xf32> to vector<16xf32>
    %238 = vector.shape_cast %237 : vector<16xf32> to vector<16x1xf32>
    %cst_84 = arith.constant 3.200000e+01 : f32
    %239 = vector.broadcast %cst_84 : f32 to vector<16x1xf32>
    %240 = arith.divf %238, %239 : vector<16x1xf32>
    %241 = vector.broadcast %233 : vector<16x1xf32> to vector<16x32xf32>
    %242 = arith.subf %227, %241 : vector<16x32xf32>
    %cst_85 = arith.constant 9.99999974E-6 : f32
    %243 = vector.broadcast %cst_85 : f32 to vector<16x1xf32>
    %244 = arith.addf %240, %243 : vector<16x1xf32>
    %245 = math.rsqrt %244 : vector<16x1xf32>
    %246 = vector.broadcast %245 : vector<16x1xf32> to vector<16x32xf32>
    %247 = arith.mulf %242, %246 : vector<16x32xf32>
    %248 = vector.broadcast %228 : vector<1x32xf32> to vector<16x32xf32>
    %249 = arith.mulf %247, %248 : vector<16x32xf32>
    %250 = vector.broadcast %229 : vector<1x32xf32> to vector<16x32xf32>
    %251 = arith.addf %249, %250 : vector<16x32xf32>
    %cst_86 = arith.constant 0.000000e+00 : f32
    %252 = vector.broadcast %cst_86 : f32 to vector<16x32xf32>
    %253 = arith.cmpf oge, %251, %252 : vector<16x32xf32>
    %cst_87 = arith.constant 0.00999999977 : f32
    %254 = vector.broadcast %cst_87 : f32 to vector<16x32xf32>
    %255 = arith.mulf %254, %251 : vector<16x32xf32>
    %256 = arith.select %253, %251, %255 : vector<16x32xi1>, vector<16x32xf32>
    %c0_88 = arith.constant 0 : index
    %c0_89 = arith.constant 0 : index
    %257 = vector.load %arg13[%c0_88, %c0_89] : memref<16x32xf32, #tpu.memory_space<vmem>>, vector<16x32xf32>
    tpu.vector_store %arg13[%c0_88, %c0_89], %256 {strides = array<i32>} : memref<16x32xf32, #tpu.memory_space<vmem>>, vector<16x32xf32>,
    return
  }
}

</mosaic_0001>

<llo_original>
// kernel: tpu_custom_call.1
$region0: #{tpu_custom_call.1}
  #allocation0 [shape = 'u32[]', space=smem, size = 0x4, offset = 0x4, fixed_abs, tag = 'smem constant byte address 0x4 - core index']
  #allocation1 [shape = 'u32[72,128]{1,0:T(1,128)}', space=vmem, size = 0x9000, scoped, tag = 'internal scratch']
  #allocation2 [shape = 'f32[16,32]{1,0:T(8,128)}', space=vmem, size = 0x2000, scoped, tag = 'scratch operand']
  %s0 = inlined_call_operand.hbm [shape: f32[16,16], index: 0, kind: input, shape index: {}]
  %s1 = inlined_call_operand.hbm [shape: f32[16,32], index: 1, kind: input, shape index: {}]
  %s2 = inlined_call_operand.vmem [shape: f32[1,32], index: 2, kind: input, shape index: {}]
  %s3 = inlined_call_operand.vmem [shape: f32[1,32], index: 3, kind: input, shape index: {}]
  %s4 = inlined_call_operand.vmem [shape: f32[1,32], index: 4, kind: input, shape index: {}]
  %s5 = inlined_call_operand.hbm [shape: f32[32,128], index: 5, kind: input, shape index: {}]
  %s6 = inlined_call_operand.hbm [shape: f32[32,128], index: 6, kind: input, shape index: {}]
  %s7 = inlined_call_operand.hbm [shape: f32[1,128], index: 7, kind: input, shape index: {}]
  %s8 = inlined_call_operand.hbm [shape: f32[32,32], index: 8, kind: input, shape index: {}]
  %s9 = inlined_call_operand.vmem [shape: f32[1,32], index: 9, kind: input, shape index: {}]
  %s10 = inlined_call_operand.vmem [shape: f32[1,32], index: 10, kind: input, shape index: {}]
  %s11 = inlined_call_operand.vmem [shape: f32[1,32], index: 11, kind: input, shape index: {}]
  %s12 = inlined_call_operand.vmem [shape: f32[4,32], index: 12, kind: input, shape index: {}]
  %s13 = inlined_call_operand.hbm [shape: f32[16,32], index: 13, kind: output, shape index: {0}]
  %s14 = inlined_call_operand.hbm [shape: f32[4,32], index: 14, kind: output, shape index: {1}]
  %15 = xla_tuple %s13, %s14
  %s16 = sld [smem:[#allocation0]]
  $region94: #{tpu_custom_call.1} parent=0
    _
  %s18 = ssub.s32 1, %s16
  %s19 = scalar_select 0, %s18, %s16
  $region1: #{tpu_custom_call.1} parent=0
    #allocation3 [shape = 'u8[8192]{0}', space=vmem, size = 0x2000, scoped, tag = 'input window, operand 0, single buffered']
    #allocation4 [shape = 's32[1]{0}', space=sflag, size = 0x4, scoped, tag = 'scoped memory for tpu_custom_call.1']
    #allocation5 [shape = 's32[1]{0}', space=sflag, size = 0x4, scoped, tag = 'scoped memory for tpu_custom_call.1']
    #allocation6 [shape = 'u8[8192]{0}', space=vmem, size = 0x2000, scoped, tag = 'input window, operand 1, single buffered']
    #allocation7 [shape = 's32[1]{0}', space=sflag, size = 0x4, scoped, tag = 'scoped memory for tpu_custom_call.1']
    #allocation8 [shape = 'u8[16384]{0}', space=vmem, size = 0x4000, scoped, tag = 'input window, operand 5, single buffered']
    #allocation9 [shape = 'u8[16384]{0}', space=vmem, size = 0x4000, scoped, tag = 'input window, operand 6, single buffered']
    #allocation10 [shape = 's32[1]{0}', space=sflag, size = 0x4, scoped, tag = 'scoped memory for tpu_custom_call.1']
    #allocation11 [shape = 'u8[512]{0}', space=vmem, size = 0x400, scoped, tag = 'input window, operand 7, single buffered']
    #allocation12 [shape = 'u8[16384]{0}', space=vmem, size = 0x4000, scoped, tag = 'input window, operand 8, single buffered']
    #allocation13 [shape = 's32[1]{0}', space=sflag, size = 0x4, scoped, tag = 'scoped memory for tpu_custom_call.1']
    #allocation14 [shape = 'u8[8192]{0}', space=vmem, size = 0x2000, scoped, tag = 'output window, operand 0, single buffered']
    #allocation15 [shape = 'u8[2048]{0}', space=vmem, size = 0x800, scoped, tag = 'output window, operand 1, single buffered']
    #allocation16 [shape = 's32[1]{0}', space=sflag, size = 0x4, scoped, tag = 'scoped memory for tpu_custom_call.1']
    %20 = vsyncpa [#allocation4], 0
    %21 = vsyncpa [#allocation7], 0
    %22 = vsyncpa [#allocation10], 0
    %23 = vsyncpa [#allocation13], 0
    %24 = vsyncpa [#allocation5], 0
    %25 = vsyncpa [#allocation16], 0
    // Predicated region
    $region2: #{tpu_custom_call.1} parent=1 // pred_check
      _
    $region3: #{tpu_custom_call.1} parent=1 // pred_check_branch
      %27 = sbr.rel (0) target = $region5
    $region4: #{tpu_custom_call.1} parent=1 // pred_region
      %29 = vsyncadd [#allocation4], 0
      %s30 = sshll.u32 %s0, 4
      %s31 = int_to_ptr.hbm [resolvable:$true] %s30
      %s32 = sshll.u32 [#allocation3], 4
      %s33 = int_to_ptr.vmem [resolvable:$true] %s32
      %38 = dma.hbm_to_vmem [thread:$0]  %s31, 256, %s33, [#allocation4], 128, 128, 8
    $region5: #{tpu_custom_call.1} parent=1 // pred_fallthru
      _
    // Predicated region
    $region6: #{tpu_custom_call.1} parent=1 // pred_check
      _
    $region7: #{tpu_custom_call.1} parent=1 // pred_check_branch
      %40 = sbr.rel (0) target = $region9
    $region8: #{tpu_custom_call.1} parent=1 // pred_region
      %42 = vsyncadd [#allocation7], 0
      %s43 = sshll.u32 %s1, 4
      %s44 = int_to_ptr.hbm [resolvable:$true] %s43
      %s45 = sshll.u32 [#allocation6], 4
      %s46 = int_to_ptr.vmem [resolvable:$true] %s45
      %51 = dma.hbm_to_vmem [thread:$0]  %s44, 256, %s46, [#allocation7], 128, 128, 8
    $region9: #{tpu_custom_call.1} parent=1 // pred_fallthru
      _
    // Predicated region
    $region10: #{tpu_custom_call.1} parent=1 // pred_check
      _
    $region11: #{tpu_custom_call.1} parent=1 // pred_check_branch
      %53 = sbr.rel (0) target = $region13
    $region12: #{tpu_custom_call.1} parent=1 // pred_region
      _
    $region13: #{tpu_custom_call.1} parent=1 // pred_fallthru
      _
    // Predicated region
    $region14: #{tpu_custom_call.1} parent=1 // pred_check
      _
    $region15: #{tpu_custom_call.1} parent=1 // pred_check_branch
      %55 = sbr.rel (0) target = $region17
    $region16: #{tpu_custom_call.1} parent=1 // pred_region
      _
    $region17: #{tpu_custom_call.1} parent=1 // pred_fallthru
      _
    // Predicated region
    $region18: #{tpu_custom_call.1} parent=1 // pred_check
      _
    $region19: #{tpu_custom_call.1} parent=1 // pred_check_branch
      %57 = sbr.rel (0) target = $region21
    $region20: #{tpu_custom_call.1} parent=1 // pred_region
      _
    $region21: #{tpu_custom_call.1} parent=1 // pred_fallthru
      _
    // Predicated region
    $region22: #{tpu_custom_call.1} parent=1 // pred_check
      _
    $region23: #{tpu_custom_call.1} parent=1 // pred_check_branch
      %59 = sbr.rel (0) target = $region25
    $region24: #{tpu_custom_call.1} parent=1 // pred_region
      %61 = vsyncadd [#allocation7], 0
      %s62 = sshll.u32 %s5, 4
      %s63 = int_to_ptr.hbm [resolvable:$true] %s62
      %s64 = sshll.u32 [#allocation8], 4
      %s65 = int_to_ptr.vmem [resolvable:$true] %s64
      %70 = dma.hbm_to_vmem [thread:$0]  %s63, 512, %s65, [#allocation7], 128, 128, 8
    $region25: #{tpu_custom_call.1} parent=1 // pred_fallthru
      _
    // Predicated region
    $region26: #{tpu_custom_call.1} parent=1 // pred_check
      _
    $region27: #{tpu_custom_call.1} parent=1 // pred_check_branch
      %72 = sbr.rel (0) target = $region29
    $region28: #{tpu_custom_call.1} parent=1 // pred_region
      %74 = vsyncadd [#allocation10], 0
      %s75 = sshll.u32 %s6, 4
      %s76 = int_to_ptr.hbm [resolvable:$true] %s75
      %s77 = sshll.u32 [#allocation9], 4
      %s78 = int_to_ptr.vmem [resolvable:$true] %s77
      %83 = dma.hbm_to_vmem [thread:$0]  %s76, 512, %s78, [#allocation10], 128, 128, 8
    $region29: #{tpu_custom_call.1} parent=1 // pred_fallthru
      _
    // Predicated region
    $region30: #{tpu_custom_call.1} parent=1 // pred_check
      _
    $region31: #{tpu_custom_call.1} parent=1 // pred_check_branch
      %85 = sbr.rel (0) target = $region33
    $region32: #{tpu_custom_call.1} parent=1 // pred_region
      %87 = vsyncadd [#allocation10], 0
      %s89 = sshll.u32 %s7, 4
      %s90 = int_to_ptr.hbm [resolvable:$true] %s89
      %s91 = sshll.u32 [#allocation11], 4
      %s92 = int_to_ptr.vmem [resolvable:$true] %s91
      %94 = dma.hbm_to_vmem [thread:$0]  %s90, 16, %s92, [#allocation10]
    $region33: #{tpu_custom_call.1} parent=1 // pred_fallthru
      _
    // Predicated region
    $region34: #{tpu_custom_call.1} parent=1 // pred_check
      _
    $region35: #{tpu_custom_call.1} parent=1 // pred_check_branch
      %96 = sbr.rel (0) target = $region37
    $region36: #{tpu_custom_call.1} parent=1 // pred_region
      %98 = vsyncadd [#allocation13], 0
      %s99 = sshll.u32 %s8, 4
      %s100 = int_to_ptr.hbm [resolvable:$true] %s99
      %s101 = sshll.u32 [#allocation12], 4
      %s102 = int_to_ptr.vmem [resolvable:$true] %s101
      %107 = dma.hbm_to_vmem [thread:$0]  %s100, 512, %s102, [#allocation13], 128, 128, 8
    $region37: #{tpu_custom_call.1} parent=1 // pred_fallthru
      _
    // Predicated region
    $region38: #{tpu_custom_call.1} parent=1 // pred_check
      _
    $region39: #{tpu_custom_call.1} parent=1 // pred_check_branch
      %109 = sbr.rel (0) target = $region41
    $region40: #{tpu_custom_call.1} parent=1 // pred_region
      _
    $region41: #{tpu_custom_call.1} parent=1 // pred_fallthru
      _
    // Predicated region
    $region42: #{tpu_custom_call.1} parent=1 // pred_check
      _
    $region43: #{tpu_custom_call.1} parent=1 // pred_check_branch
      %111 = sbr.rel (0) target = $region45
    $region44: #{tpu_custom_call.1} parent=1 // pred_region
      _
    $region45: #{tpu_custom_call.1} parent=1 // pred_fallthru
      _
    // Predicated region
    $region46: #{tpu_custom_call.1} parent=1 // pred_check
      _
    $region47: #{tpu_custom_call.1} parent=1 // pred_check_branch
      %113 = sbr.rel (0) target = $region49
    $region48: #{tpu_custom_call.1} parent=1 // pred_region
      _
    $region49: #{tpu_custom_call.1} parent=1 // pred_fallthru
      _
    // Predicated region
    $region50: #{tpu_custom_call.1} parent=1 // pred_check
      _
    $region51: #{tpu_custom_call.1} parent=1 // pred_check_branch
      %115 = sbr.rel (0) target = $region53
    $region52: #{tpu_custom_call.1} parent=1 // pred_region
      _
    $region53: #{tpu_custom_call.1} parent=1 // pred_fallthru
      _
    // Predicated region
    $region54: #{tpu_custom_call.1} parent=1 // pred_check
      _
    $region55: #{tpu_custom_call.1} parent=1 // pred_check_branch
      %117 = sbr.rel (0) target = $region57
    $region56: #{tpu_custom_call.1} parent=1 // pred_region
      %119 = dma.done [#allocation4], 256
    $region57: #{tpu_custom_call.1} parent=1 // pred_fallthru
      _
    // Predicated region
    $region58: #{tpu_custom_call.1} parent=1 // pred_check
      _
    $region59: #{tpu_custom_call.1} parent=1 // pred_check_branch
      %121 = sbr.rel (0) target = $region61
    $region60: #{tpu_custom_call.1} parent=1 // pred_region
      %123 = dma.done [#allocation7], 256
    $region61: #{tpu_custom_call.1} parent=1 // pred_fallthru
      _
    // Predicated region
    $region62: #{tpu_custom_call.1} parent=1 // pred_check
      _
    $region63: #{tpu_custom_call.1} parent=1 // pred_check_branch
      %125 = sbr.rel (0) target = $region65
    $region64: #{tpu_custom_call.1} parent=1 // pred_region
      %127 = dma.done [#allocation7], 512
    $region65: #{tpu_custom_call.1} parent=1 // pred_fallthru
      _
    // Predicated region
    $region66: #{tpu_custom_call.1} parent=1 // pred_check
      _
    $region67: #{tpu_custom_call.1} parent=1 // pred_check_branch
      %129 = sbr.rel (0) target = $region69
    $region68: #{tpu_custom_call.1} parent=1 // pred_region
      %131 = dma.done [#allocation10], 512
    $region69: #{tpu_custom_call.1} parent=1 // pred_fallthru
      _
    // Predicated region
    $region70: #{tpu_custom_call.1} parent=1 // pred_check
      _
    $region71: #{tpu_custom_call.1} parent=1 // pred_check_branch
      %133 = sbr.rel (0) target = $region73
    $region72: #{tpu_custom_call.1} parent=1 // pred_region
      %135 = dma.done [#allocation10], 16
    $region73: #{tpu_custom_call.1} parent=1 // pred_fallthru
      _
    // Predicated region
    $region74: #{tpu_custom_call.1} parent=1 // pred_check
      _
    $region75: #{tpu_custom_call.1} parent=1 // pred_check_branch
      %137 = sbr.rel (0) target = $region77
    $region76: #{tpu_custom_call.1} parent=1 // pred_region
      %139 = dma.done [#allocation13], 512
    $region77: #{tpu_custom_call.1} parent=1 // pred_fallthru
      _
    %v140 = vld [vmem:[#allocation3] sm:$0xff]
    %v141 = vld [vmem:[#allocation3 + $0x8] sm:$0xff]
    %v142 = vld [vmem:[#allocation6] sm:$0xff]
    %v143 = vld [vmem:[#allocation6 + $0x8] sm:$0xff]
    %v144 = vld [vmem:[%s2] sm:$0x1]
    %v146 = vperm.slane %v144, 0
    %vm148 = vcmask 130048
    %v150 = vsel %vm148, %v140, 0
    %v153 = vsel %vm148, %v141, 0
    %155 = vmatpush.msra.mxu0 0.0
    %156 = vmatpush.msra.mxu0 0.0
    %157 = vmatpush.msra.mxu0 0.0
    %158 = vmatpush.msra.mxu0 0.0
    %159 = vmatpush.msra.mxu0 0.0
    %160 = vmatpush.msra.mxu0 0.0
    %161 = vmatpush.msra.mxu0 0.0
    %162 = vmatpush.msra.mxu0 0.0
    %163 = vmatpush.msra.mxu0 0.0
    %164 = vmatpush.msra.mxu0 0.0
    %165 = vmatpush.msra.mxu0 0.0
    %166 = vmatpush.msra.mxu0 0.0
    %167 = vmatpush.msra.mxu0 0.0
    %168 = vmatpush.msra.mxu0 0.0
    %169 = vmatpush.msra.mxu0 %v143
    %170 = vmatpush.msra.mxu0 %v142
    %171 = vmatmul.f32.gmra.mxu0 %v150
    %v172 = vpop.f32.mrf.mxu0
    %v173 = vadd.f32 %v146, %v172
    %174 = vmatmul.f32.gmra.mxu0 %v153
    %v175 = vpop.f32.mrf.mxu0
    %v176 = vadd.f32 %v146, %v175
    %177 = vdwg.mxu0
    %v178 = vld [vmem:[%s3] sm:$0x1]
    %v179 = vld [vmem:[%s4] sm:$0x1]
    %vm180 = vcmask 261120
    %v181 = vsel %vm180, %v173, 0.0
    %182 = vadd.xlane.f32.xlu0 %v181
    %v183 = vpop.xlane.xlu0 %182
    %v184 = vsel %vm180, %v176, 0.0
    %185 = vadd.xlane.f32.xlu0 %v184
    %v186 = vpop.xlane.xlu0 %185
    %v187 = vrcp.pop 32.0
    %v188 = vmul.f32 32.0, %v187
    %v189 = vsub.f32 1.0, %v188
    %v190 = vmul.f32 %v187, %v189
    %v191 = vadd.f32 %v187, %v190
    %vm192 = vweird.f32 %v187
    %v193 = vsel %vm192, %v187, %v191
    %v194 = vmul.f32 %v183, %v193
    %v195 = vmul.f32 %v186, %v193
    %v196 = vsub.f32 %v173, %v194
    %v197 = vsub.f32 %v176, %v195
    %v198 = vmul.f32 %v196, %v196
    %v199 = vmul.f32 %v197, %v197
    %v200 = vsel %vm180, %v198, 0.0
    %201 = vadd.xlane.f32.xlu0 %v200
    %v202 = vpop.xlane.xlu0 %201
    %v203 = vsel %vm180, %v199, 0.0
    %204 = vadd.xlane.f32.xlu0 %v203
    %v205 = vpop.xlane.xlu0 %204
    %v206 = vmul.f32 %v202, %v193
    %v207 = vmul.f32 %v205, %v193
    %v208 = vadd.f32 %v206, 1e-05
    %v209 = vadd.f32 %v207, 1e-05
    %v210 = vrsqrt.pop %v208
    %v211 = vmul.f32 %v210, %v208
    %v212 = vmul.f32 %v211, %v210
    %v213 = vmul.f32 0.5, %v212
    %v214 = vsub.f32 1.5, %v213
    %v215 = vmul.f32 %v210, %v214
    %vm216 = vweird.f32 %v208
    %vm217 = vweird.f32 %v210
    %vm218 = vmor %vm216, %vm217
    %v219 = vsel %vm218, %v210, %v215
    %v220 = vrsqrt.pop %v209
    %v221 = vmul.f32 %v220, %v209
    %v222 = vmul.f32 %v221, %v220
    %v223 = vmul.f32 0.5, %v222
    %v224 = vsub.f32 1.5, %v223
    %v225 = vmul.f32 %v220, %v224
    %vm226 = vweird.f32 %v209
    %vm227 = vweird.f32 %v220
    %vm228 = vmor %vm226, %vm227
    %v229 = vsel %vm228, %v220, %v225
    %v230 = vmul.f32 %v196, %v219
    %v231 = vmul.f32 %v197, %v229
    %v233 = vperm.slane %v178, 0
    %v235 = vmul.f32 %v230, %v233
    %v236 = vmul.f32 %v231, %v233
    %v238 = vperm.slane %v179, 0
    %v240 = vadd.f32 %v235, %v238
    %v241 = vadd.f32 %v236, %v238
    %vm242 = vcmp.ge.f32.partialorder %v240, 0.0
    %vm243 = vcmp.ge.f32.partialorder %v241, 0.0
    %v244 = vmul.f32 %v240, 0.01
    %v245 = vmul.f32 %v241, 0.01
    %v246 = vsel %vm242, %v240, %v244
    %v247 = vsel %vm243, %v241, %v245
    %v248 = vld [vmem:[#allocation8] sm:$0xff]
    %v249 = vld [vmem:[#allocation8 + $0x8] sm:$0xff]
    %v250 = vld [vmem:[#allocation8 + $0x10] sm:$0xff]
    %v251 = vld [vmem:[#allocation8 + $0x18] sm:$0xff]
    %v252 = vld [vmem:[#allocation11] sm:$0x1]
    %v254 = vperm.slane %v252, 0
    %v257 = vsel %vm180, %v246, 0
    %v260 = vsel %vm180, %v247, 0
    %262 = vmatpush.msra.mxu0 0.0
    %263 = vmatpush.msra.mxu0 0.0
    %264 = vmatpush.msra.mxu0 0.0
    %265 = vmatpush.msra.mxu0 0.0
    %266 = vmatpush.msra.mxu0 0.0
    %267 = vmatpush.msra.mxu0 0.0
    %268 = vmatpush.msra.mxu0 0.0
    %269 = vmatpush.msra.mxu0 0.0
    %270 = vmatpush.msra.mxu0 0.0
    %271 = vmatpush.msra.mxu0 0.0
    %272 = vmatpush.msra.mxu0 0.0
    %273 = vmatpush.msra.mxu0 0.0
    %274 = vmatpush.msra.mxu0 %v251
    %275 = vmatpush.msra.mxu0 %v250
    %276 = vmatpush.msra.mxu0 %v249
    %277 = vmatpush.msra.mxu0 %v248
    %278 = vmatmul.f32.gmra.mxu0 %v257
    %v279 = vpop.f32.mrf.mxu0
    %v280 = vadd.f32 %v254, %v279
    %281 = vmatmul.f32.gmra.mxu0 %v260
    %v282 = vpop.f32.mrf.mxu0
    %v283 = vadd.f32 %v254, %v282
    %284 = vdwg.mxu0
    %v285 = vld [vmem:[#allocation9] sm:$0xff]
    %v286 = vld [vmem:[#allocation9 + $0x8] sm:$0xff]
    %v287 = vld [vmem:[#allocation9 + $0x10] sm:$0xff]
    %v288 = vld [vmem:[#allocation9 + $0x18] sm:$0xff]
    %v289 = vld [vmem:[%s12] sm:$0x3]
    %v290 = vld [vmem:[%s12 + $0x2] sm:$0x3]
    %v292 = vsel %vm180, %v289, 0
    %294 = vmatpush.msra.mxu0 0.0
    %295 = vmatpush.msra.mxu0 0.0
    %296 = vmatpush.msra.mxu0 0.0
    %297 = vmatpush.msra.mxu0 0.0
    %298 = vmatpush.msra.mxu0 0.0
    %299 = vmatpush.msra.mxu0 0.0
    %300 = vmatpush.msra.mxu0 0.0
    %301 = vmatpush.msra.mxu0 0.0
    %302 = vmatpush.msra.mxu0 0.0
    %303 = vmatpush.msra.mxu0 0.0
    %304 = vmatpush.msra.mxu0 0.0
    %305 = vmatpush.msra.mxu0 0.0
    %306 = vmatpush.msra.mxu0 %v288
    %307 = vmatpush.msra.mxu0 %v287
    %308 = vmatpush.msra.mxu0 %v286
    %309 = vmatpush.msra.mxu0 %v285
    %310 = vmatmul.f32.gmra.mxu0 %v292
    %v311 = vpop.f32.mrf.mxu0
    %v312 = vadd.f32 0.0, %v311
    %313 = vdwg.mxu0
    %v314 = vadd.f32 %v280, %v312
    %v315 = vxor.u32 %v314, 2147483648
    %v316 = vmul.f32 %v315, 1.442695
    %v317 = vpow.pop %v316
    %v318 = vadd.f32 %v317, 1.0
    %v319 = vrcp.pop %v318
    %v320 = vmul.f32 %v318, %v319
    %v321 = vsub.f32 1.0, %v320
    %v322 = vmul.f32 %v319, %v321
    %v323 = vadd.f32 %v319, %v322
    %vm324 = vweird.f32 %v318
    %vm325 = vweird.f32 %v319
    %vm326 = vmor %vm324, %vm325
    %v327 = vsel %vm326, %v319, %v323
    %v328 = vand.u32 2147483647, %v318
    %vm329 = vcmp.eq.f32.partialorder %v328, 8.507059e+37
    %v330 = vand.u32 %v318, 2147483648
    %v331 = vor.u32 1.1754944e-38, %v330
    %v332 = vsel %vm329, %v331, %v327
    %v333 = vmul.f32 1.0, %v332
    %v334 = vmul.f32 %v333, 2.0
    %v335 = vsub.f32 %v334, 1.0
    %337 = vrot.lane.b32.xlu0 %v290, 32
    %v338 = vpop.permute.xlu0 %337
    %v340 = vmul.f32 %v333, %v338
    %342 = vrot.lane.b32.xlu0 %v335, 64
    %v343 = vpop.permute.xlu0 %342
    %v345 = vmul.f32 %v333, %v343
    %347 = vrot.lane.b32.xlu0 %v345, 32
    %v348 = vpop.permute.xlu0 %347
    %v350 = vadd.f32 %v340, %v348
    %v351 = vtanh.pop %v350
    %353 = vrot.lane.b32.xlu0 %v351, 64
    %v354 = vpop.permute.xlu0 %353
    %v356 = vmul.f32 %v333, %v354
    %358 = vrot.lane.b32.xlu0 %v356, 32
    %v359 = vpop.permute.xlu0 %358
    %vm361 = vcmask 254976
    %362 = vst.msk [vmem:[#allocation2] sm:$0x3] %vm361, %v359
    %v363 = vsel %vm180, %v359, 0
    %365 = vmatpush.msra.mxu0 0.0
    %366 = vmatpush.msra.mxu0 0.0
    %367 = vmatpush.msra.mxu0 0.0
    %368 = vmatpush.msra.mxu0 0.0
    %369 = vmatpush.msra.mxu0 0.0
    %370 = vmatpush.msra.mxu0 0.0
    %371 = vmatpush.msra.mxu0 0.0
    %372 = vmatpush.msra.mxu0 0.0
    %373 = vmatpush.msra.mxu0 0.0
    %374 = vmatpush.msra.mxu0 0.0
    %375 = vmatpush.msra.mxu0 0.0
    %376 = vmatpush.msra.mxu0 0.0
    %377 = vmatpush.msra.mxu0 %v288
    %378 = vmatpush.msra.mxu0 %v287
    %379 = vmatpush.msra.mxu0 %v286
    %380 = vmatpush.msra.mxu0 %v285
    %381 = vmatmul.f32.gmra.mxu0 %v363
    %v382 = vpop.f32.mrf.mxu0
    %v383 = vadd.f32 0.0, %v382
    %384 = vdwg.mxu0
    %v386 = vrot.slane %v383, 6
    %v388 = vadd.f32 %v280, %v386
    %v389 = vxor.u32 %v388, 2147483648
    %v390 = vmul.f32 %v389, 1.442695
    %v391 = vpow.pop %v390
    %v392 = vadd.f32 %v391, 1.0
    %v393 = vrcp.pop %v392
    %v394 = vmul.f32 %v392, %v393
    %v395 = vsub.f32 1.0, %v394
    %v396 = vmul.f32 %v393, %v395
    %v397 = vadd.f32 %v393, %v396
    %vm398 = vweird.f32 %v392
    %vm399 = vweird.f32 %v393
    %vm400 = vmor %vm398, %vm399
    %v401 = vsel %vm400, %v393, %v397
    %v402 = vand.u32 2147483647, %v392
    %vm403 = vcmp.eq.f32.partialorder %v402, 8.507059e+37
    %v404 = vand.u32 %v392, 2147483648
    %v405 = vor.u32 1.1754944e-38, %v404
    %v406 = vsel %vm403, %v405, %v401
    %v407 = vmul.f32 1.0, %v406
    %v408 = vmul.f32 %v407, 2.0
    %v409 = vsub.f32 %v408, 1.0
    %v411 = vrot.slane %v350, 6
    %v413 = vmul.f32 %v407, %v411
    %415 = vrot.lane.b32.xlu0 %v409, 64
    %v416 = vpop.permute.xlu0 %415
    %v418 = vmul.f32 %v407, %v416
    %420 = vrot.lane.b32.xlu0 %v418, 32
    %v421 = vpop.permute.xlu0 %420
    %v423 = vadd.f32 %v413, %v421
    %v424 = vtanh.pop %v423
    %426 = vrot.lane.b32.xlu0 %v424, 64
    %v427 = vpop.permute.xlu0 %426
    %v429 = vmul.f32 %v407, %v427
    %431 = vrot.lane.b32.xlu0 %v429, 32
    %v432 = vpop.permute.xlu0 %431
    %vm434 = vcmask 257026
    %435 = vst.msk [vmem:[#allocation2] sm:$0xc] %vm434, %v432
    %v436 = vrot.slane %v429, 2
    %437 = vrot.lane.b32.xlu0 %v436, 32
    %v438 = vpop.permute.xlu0 %437
    %v439 = vsel %vm180, %v438, 0
    %441 = vmatpush.msra.mxu0 0.0
    %442 = vmatpush.msra.mxu0 0.0
    %443 = vmatpush.msra.mxu0 0.0
    %444 = vmatpush.msra.mxu0 0.0
    %445 = vmatpush.msra.mxu0 0.0
    %446 = vmatpush.msra.mxu0 0.0
    %447 = vmatpush.msra.mxu0 0.0
    %448 = vmatpush.msra.mxu0 0.0
    %449 = vmatpush.msra.mxu0 0.0
    %450 = vmatpush.msra.mxu0 0.0
    %451 = vmatpush.msra.mxu0 0.0
    %452 = vmatpush.msra.mxu0 0.0
    %453 = vmatpush.msra.mxu0 %v288
    %454 = vmatpush.msra.mxu0 %v287
    %455 = vmatpush.msra.mxu0 %v286
    %456 = vmatpush.msra.mxu0 %v285
    %457 = vmatmul.f32.gmra.mxu0 %v439
    %v458 = vpop.f32.mrf.mxu0
    %v459 = vadd.f32 0.0, %v458
    %460 = vdwg.mxu0
    %v462 = vrot.slane %v459, 4
    %v464 = vadd.f32 %v280, %v462
    %v465 = vxor.u32 %v464, 2147483648
    %v466 = vmul.f32 %v465, 1.442695
    %v467 = vpow.pop %v466
    %v468 = vadd.f32 %v467, 1.0
    %v469 = vrcp.pop %v468
    %v470 = vmul.f32 %v468, %v469
    %v471 = vsub.f32 1.0, %v470
    %v472 = vmul.f32 %v469, %v471
    %v473 = vadd.f32 %v469, %v472
    %vm474 = vweird.f32 %v468
    %vm475 = vweird.f32 %v469
    %vm476 = vmor %vm474, %vm475
    %v477 = vsel %vm476, %v469, %v473
    %v478 = vand.u32 2147483647, %v468
    %vm479 = vcmp.eq.f32.partialorder %v478, 8.507059e+37
    %v480 = vand.u32 %v468, 2147483648
    %v481 = vor.u32 1.1754944e-38, %v480
    %v482 = vsel %vm479, %v481, %v477
    %v483 = vmul.f32 1.0, %v482
    %v484 = vmul.f32 %v483, 2.0
    %v485 = vsub.f32 %v484, 1.0
    %v487 = vrot.slane %v423, 6
    %v489 = vmul.f32 %v483, %v487
    %491 = vrot.lane.b32.xlu0 %v485, 64
    %v492 = vpop.permute.xlu0 %491
    %v494 = vmul.f32 %v483, %v492
    %496 = vrot.lane.b32.xlu0 %v494, 32
    %v497 = vpop.permute.xlu0 %496
    %v499 = vadd.f32 %v489, %v497
    %v500 = vtanh.pop %v499
    %502 = vrot.lane.b32.xlu0 %v500, 64
    %v503 = vpop.permute.xlu0 %502
    %v505 = vmul.f32 %v483, %v503
    %507 = vrot.lane.b32.xlu0 %v505, 32
    %v508 = vpop.permute.xlu0 %507
    %vm510 = vcmask 259076
    %511 = vst.msk [vmem:[#allocation2] sm:$0x30] %vm510, %v508
    %v512 = vrot.slane %v505, 4
    %513 = vrot.lane.b32.xlu0 %v512, 32
    %v514 = vpop.permute.xlu0 %513
    %v515 = vsel %vm180, %v514, 0
    %517 = vmatpush.msra.mxu0 0.0
    %518 = vmatpush.msra.mxu0 0.0
    %519 = vmatpush.msra.mxu0 0.0
    %520 = vmatpush.msra.mxu0 0.0
    %521 = vmatpush.msra.mxu0 0.0
    %522 = vmatpush.msra.mxu0 0.0
    %523 = vmatpush.msra.mxu0 0.0
    %524 = vmatpush.msra.mxu0 0.0
    %525 = vmatpush.msra.mxu0 0.0
    %526 = vmatpush.msra.mxu0 0.0
    %527 = vmatpush.msra.mxu0 0.0
    %528 = vmatpush.msra.mxu0 0.0
    %529 = vmatpush.msra.mxu0 %v288
    %530 = vmatpush.msra.mxu0 %v287
    %531 = vmatpush.msra.mxu0 %v286
    %532 = vmatpush.msra.mxu0 %v285
    %533 = vmatmul.f32.gmra.mxu0 %v515
    %v534 = vpop.f32.mrf.mxu0
    %v535 = vadd.f32 0.0, %v534
    %536 = vdwg.mxu0
    %v538 = vrot.slane %v535, 2
    %v540 = vadd.f32 %v280, %v538
    %v541 = vxor.u32 %v540, 2147483648
    %v542 = vmul.f32 %v541, 1.442695
    %v543 = vpow.pop %v542
    %v544 = vadd.f32 %v543, 1.0
    %v545 = vrcp.pop %v544
    %v546 = vmul.f32 %v544, %v545
    %v547 = vsub.f32 1.0, %v546
    %v548 = vmul.f32 %v545, %v547
    %v549 = vadd.f32 %v545, %v548
    %vm550 = vweird.f32 %v544
    %vm551 = vweird.f32 %v545
    %vm552 = vmor %vm550, %vm551
    %v553 = vsel %vm552, %v545, %v549
    %v554 = vand.u32 2147483647, %v544
    %vm555 = vcmp.eq.f32.partialorder %v554, 8.507059e+37
    %v556 = vand.u32 %v544, 2147483648
    %v557 = vor.u32 1.1754944e-38, %v556
    %v558 = vsel %vm555, %v557, %v553
    %v559 = vmul.f32 1.0, %v558
    %v560 = vmul.f32 %v559, 2.0
    %v561 = vsub.f32 %v560, 1.0
    %v563 = vrot.slane %v499, 6
    %v565 = vmul.f32 %v559, %v563
    %567 = vrot.lane.b32.xlu0 %v561, 64
    %v568 = vpop.permute.xlu0 %567
    %v570 = vmul.f32 %v559, %v568
    %572 = vrot.lane.b32.xlu0 %v570, 32
    %v573 = vpop.permute.xlu0 %572
    %v575 = vadd.f32 %v565, %v573
    %v576 = vtanh.pop %v575
    %578 = vrot.lane.b32.xlu0 %v576, 64
    %v579 = vpop.permute.xlu0 %578
    %v581 = vmul.f32 %v559, %v579
    %583 = vrot.lane.b32.xlu0 %v581, 32
    %v584 = vpop.permute.xlu0 %583
    %vm586 = vcmask 261126
    %587 = vst.msk [vmem:[#allocation2] sm:$0xc0] %vm586, %v584
    %v588 = vrot.slane %v581, 6
    %589 = vrot.lane.b32.xlu0 %v588, 32
    %v590 = vpop.permute.xlu0 %589
    %v591 = vsel %vm180, %v590, 0
    %593 = vmatpush.msra.mxu0 0.0
    %594 = vmatpush.msra.mxu0 0.0
    %595 = vmatpush.msra.mxu0 0.0
    %596 = vmatpush.msra.mxu0 0.0
    %597 = vmatpush.msra.mxu0 0.0
    %598 = vmatpush.msra.mxu0 0.0
    %599 = vmatpush.msra.mxu0 0.0
    %600 = vmatpush.msra.mxu0 0.0
    %601 = vmatpush.msra.mxu0 0.0
    %602 = vmatpush.msra.mxu0 0.0
    %603 = vmatpush.msra.mxu0 0.0
    %604 = vmatpush.msra.mxu0 0.0
    %605 = vmatpush.msra.mxu0 %v288
    %606 = vmatpush.msra.mxu0 %v287
    %607 = vmatpush.msra.mxu0 %v286
    %608 = vmatpush.msra.mxu0 %v285
    %609 = vmatmul.f32.gmra.mxu0 %v591
    %v610 = vpop.f32.mrf.mxu0
    %v611 = vadd.f32 0.0, %v610
    %612 = vdwg.mxu0
    %v613 = vadd.f32 %v283, %v611
    %v614 = vxor.u32 %v613, 2147483648
    %v615 = vmul.f32 %v614, 1.442695
    %v616 = vpow.pop %v615
    %v617 = vadd.f32 %v616, 1.0
    %v618 = vrcp.pop %v617
    %v619 = vmul.f32 %v617, %v618
    %v620 = vsub.f32 1.0, %v619
    %v621 = vmul.f32 %v618, %v620
    %v622 = vadd.f32 %v618, %v621
    %vm623 = vweird.f32 %v617
    %vm624 = vweird.f32 %v618
    %vm625 = vmor %vm623, %vm624
    %v626 = vsel %vm625, %v618, %v622
    %v627 = vand.u32 2147483647, %v617
    %vm628 = vcmp.eq.f32.partialorder %v627, 8.507059e+37
    %v629 = vand.u32 %v617, 2147483648
    %v630 = vor.u32 1.1754944e-38, %v629
    %v631 = vsel %vm628, %v630, %v626
    %v632 = vmul.f32 1.0, %v631
    %v633 = vmul.f32 %v632, 2.0
    %v634 = vsub.f32 %v633, 1.0
    %v636 = vrot.slane %v575, 6
    %v638 = vmul.f32 %v632, %v636
    %640 = vrot.lane.b32.xlu0 %v634, 64
    %v641 = vpop.permute.xlu0 %640
    %v643 = vmul.f32 %v632, %v641
    %645 = vrot.lane.b32.xlu0 %v643, 32
    %v646 = vpop.permute.xlu0 %645
    %v648 = vadd.f32 %v638, %v646
    %v649 = vtanh.pop %v648
    %651 = vrot.lane.b32.xlu0 %v649, 64
    %v652 = vpop.permute.xlu0 %651
    %v654 = vmul.f32 %v632, %v652
    %656 = vrot.lane.b32.xlu0 %v654, 32
    %v657 = vpop.permute.xlu0 %656
    %659 = vst.msk [vmem:[#allocation2 + $0x8] sm:$0x3] %vm361, %v657
    %v660 = vsel %vm180, %v657, 0
    %662 = vmatpush.msra.mxu0 0.0
    %663 = vmatpush.msra.mxu0 0.0
    %664 = vmatpush.msra.mxu0 0.0
    %665 = vmatpush.msra.mxu0 0.0
    %666 = vmatpush.msra.mxu0 0.0
    %667 = vmatpush.msra.mxu0 0.0
    %668 = vmatpush.msra.mxu0 0.0
    %669 = vmatpush.msra.mxu0 0.0
    %670 = vmatpush.msra.mxu0 0.0
    %671 = vmatpush.msra.mxu0 0.0
    %672 = vmatpush.msra.mxu0 0.0
    %673 = vmatpush.msra.mxu0 0.0
    %674 = vmatpush.msra.mxu0 %v288
    %675 = vmatpush.msra.mxu0 %v287
    %676 = vmatpush.msra.mxu0 %v286
    %677 = vmatpush.msra.mxu0 %v285
    %678 = vmatmul.f32.gmra.mxu0 %v660
    %v679 = vpop.f32.mrf.mxu0
    %v680 = vadd.f32 0.0, %v679
    %681 = vdwg.mxu0
    %v683 = vrot.slane %v680, 6
    %v685 = vadd.f32 %v283, %v683
    %v686 = vxor.u32 %v685, 2147483648
    %v687 = vmul.f32 %v686, 1.442695
    %v688 = vpow.pop %v687
    %v689 = vadd.f32 %v688, 1.0
    %v690 = vrcp.pop %v689
    %v691 = vmul.f32 %v689, %v690
    %v692 = vsub.f32 1.0, %v691
    %v693 = vmul.f32 %v690, %v692
    %v694 = vadd.f32 %v690, %v693
    %vm695 = vweird.f32 %v689
    %vm696 = vweird.f32 %v690
    %vm697 = vmor %vm695, %vm696
    %v698 = vsel %vm697, %v690, %v694
    %v699 = vand.u32 2147483647, %v689
    %vm700 = vcmp.eq.f32.partialorder %v699, 8.507059e+37
    %v701 = vand.u32 %v689, 2147483648
    %v702 = vor.u32 1.1754944e-38, %v701
    %v703 = vsel %vm700, %v702, %v698
    %v704 = vmul.f32 1.0, %v703
    %v705 = vmul.f32 %v704, 2.0
    %v706 = vsub.f32 %v705, 1.0
    %v708 = vrot.slane %v648, 6
    %v710 = vmul.f32 %v704, %v708
    %712 = vrot.lane.b32.xlu0 %v706, 64
    %v713 = vpop.permute.xlu0 %712
    %v715 = vmul.f32 %v704, %v713
    %717 = vrot.lane.b32.xlu0 %v715, 32
    %v718 = vpop.permute.xlu0 %717
    %v720 = vadd.f32 %v710, %v718
    %v721 = vtanh.pop %v720
    %723 = vrot.lane.b32.xlu0 %v721, 64
    %v724 = vpop.permute.xlu0 %723
    %v726 = vmul.f32 %v704, %v724
    %728 = vrot.lane.b32.xlu0 %v726, 32
    %v729 = vpop.permute.xlu0 %728
    %731 = vst.msk [vmem:[#allocation2 + $0x8] sm:$0xc] %vm434, %v729
    %v732 = vrot.slane %v726, 2
    %733 = vrot.lane.b32.xlu0 %v732, 32
    %v734 = vpop.permute.xlu0 %733
    %v735 = vsel %vm180, %v734, 0
    %737 = vmatpush.msra.mxu0 0.0
    %738 = vmatpush.msra.mxu0 0.0
    %739 = vmatpush.msra.mxu0 0.0
    %740 = vmatpush.msra.mxu0 0.0
    %741 = vmatpush.msra.mxu0 0.0
    %742 = vmatpush.msra.mxu0 0.0
    %743 = vmatpush.msra.mxu0 0.0
    %744 = vmatpush.msra.mxu0 0.0
    %745 = vmatpush.msra.mxu0 0.0
    %746 = vmatpush.msra.mxu0 0.0
    %747 = vmatpush.msra.mxu0 0.0
    %748 = vmatpush.msra.mxu0 0.0
    %749 = vmatpush.msra.mxu0 %v288
    %750 = vmatpush.msra.mxu0 %v287
    %751 = vmatpush.msra.mxu0 %v286
    %752 = vmatpush.msra.mxu0 %v285
    %753 = vmatmul.f32.gmra.mxu0 %v735
    %v754 = vpop.f32.mrf.mxu0
    %v755 = vadd.f32 0.0, %v754
    %756 = vdwg.mxu0
    %v758 = vrot.slane %v755, 4
    %v760 = vadd.f32 %v283, %v758
    %v761 = vxor.u32 %v760, 2147483648
    %v762 = vmul.f32 %v761, 1.442695
    %v763 = vpow.pop %v762
    %v764 = vadd.f32 %v763, 1.0
    %v765 = vrcp.pop %v764
    %v766 = vmul.f32 %v764, %v765
    %v767 = vsub.f32 1.0, %v766
    %v768 = vmul.f32 %v765, %v767
    %v769 = vadd.f32 %v765, %v768
    %vm770 = vweird.f32 %v764
    %vm771 = vweird.f32 %v765
    %vm772 = vmor %vm770, %vm771
    %v773 = vsel %vm772, %v765, %v769
    %v774 = vand.u32 2147483647, %v764
    %vm775 = vcmp.eq.f32.partialorder %v774, 8.507059e+37
    %v776 = vand.u32 %v764, 2147483648
    %v777 = vor.u32 1.1754944e-38, %v776
    %v778 = vsel %vm775, %v777, %v773
    %v779 = vmul.f32 1.0, %v778
    %v780 = vmul.f32 %v779, 2.0
    %v781 = vsub.f32 %v780, 1.0
    %v783 = vrot.slane %v720, 6
    %v785 = vmul.f32 %v779, %v783
    %787 = vrot.lane.b32.xlu0 %v781, 64
    %v788 = vpop.permute.xlu0 %787
    %v790 = vmul.f32 %v779, %v788
    %792 = vrot.lane.b32.xlu0 %v790, 32
    %v793 = vpop.permute.xlu0 %792
    %v795 = vadd.f32 %v785, %v793
    %v796 = vtanh.pop %v795
    %798 = vrot.lane.b32.xlu0 %v796, 64
    %v799 = vpop.permute.xlu0 %798
    %v801 = vmul.f32 %v779, %v799
    %803 = vrot.lane.b32.xlu0 %v801, 32
    %v804 = vpop.permute.xlu0 %803
    %806 = vst.msk [vmem:[#allocation2 + $0x8] sm:$0x30] %vm510, %v804
    %v807 = vrot.slane %v801, 4
    %808 = vrot.lane.b32.xlu0 %v807, 32
    %v809 = vpop.permute.xlu0 %808
    %v810 = vsel %vm180, %v809, 0
    %812 = vmatpush.msra.mxu0 0.0
    %813 = vmatpush.msra.mxu0 0.0
    %814 = vmatpush.msra.mxu0 0.0
    %815 = vmatpush.msra.mxu0 0.0
    %816 = vmatpush.msra.mxu0 0.0
    %817 = vmatpush.msra.mxu0 0.0
    %818 = vmatpush.msra.mxu0 0.0
    %819 = vmatpush.msra.mxu0 0.0
    %820 = vmatpush.msra.mxu0 0.0
    %821 = vmatpush.msra.mxu0 0.0
    %822 = vmatpush.msra.mxu0 0.0
    %823 = vmatpush.msra.mxu0 0.0
    %824 = vmatpush.msra.mxu0 %v288
    %825 = vmatpush.msra.mxu0 %v287
    %826 = vmatpush.msra.mxu0 %v286
    %827 = vmatpush.msra.mxu0 %v285
    %828 = vmatmul.f32.gmra.mxu0 %v810
    %v829 = vpop.f32.mrf.mxu0
    %v830 = vadd.f32 0.0, %v829
    %831 = vdwg.mxu0
    %v833 = vrot.slane %v830, 2
    %v835 = vadd.f32 %v283, %v833
    %v836 = vxor.u32 %v835, 2147483648
    %v837 = vmul.f32 %v836, 1.442695
    %v838 = vpow.pop %v837
    %v839 = vadd.f32 %v838, 1.0
    %v840 = vrcp.pop %v839
    %v841 = vmul.f32 %v839, %v840
    %v842 = vsub.f32 1.0, %v841
    %v843 = vmul.f32 %v840, %v842
    %v844 = vadd.f32 %v840, %v843
    %vm845 = vweird.f32 %v839
    %vm846 = vweird.f32 %v840
    %vm847 = vmor %vm845, %vm846
    %v848 = vsel %vm847, %v840, %v844
    %v849 = vand.u32 2147483647, %v839
    %vm850 = vcmp.eq.f32.partialorder %v849, 8.507059e+37
    %v851 = vand.u32 %v839, 2147483648
    %v852 = vor.u32 1.1754944e-38, %v851
    %v853 = vsel %vm850, %v852, %v848
    %v854 = vmul.f32 1.0, %v853
    %v855 = vmul.f32 %v854, 2.0
    %v856 = vsub.f32 %v855, 1.0
    %v858 = vrot.slane %v795, 6
    %v860 = vmul.f32 %v854, %v858
    %862 = vrot.lane.b32.xlu0 %v856, 64
    %v863 = vpop.permute.xlu0 %862
    %v865 = vmul.f32 %v854, %v863
    %867 = vrot.lane.b32.xlu0 %v865, 32
    %v868 = vpop.permute.xlu0 %867
    %v870 = vadd.f32 %v860, %v868
    %v871 = vtanh.pop %v870
    %873 = vrot.lane.b32.xlu0 %v871, 64
    %v874 = vpop.permute.xlu0 %873
    %v876 = vmul.f32 %v854, %v874
    %878 = vrot.lane.b32.xlu0 %v876, 32
    %v879 = vpop.permute.xlu0 %878
    %881 = vst.msk [vmem:[#allocation2 + $0x8] sm:$0xc0] %vm586, %v879
    %v882 = vrot.slane %v876, 6
    %v885 = vrot.slane %v870, 4
    %886 = vrot.lane.b32.xlu0 %v885, 64
    %v887 = vpop.permute.xlu0 %886
    %vm889 = vcmask 1041408
    %v890 = vsel %vm889, %v882, %v887
    %892 = vrot.lane.b32.xlu0 %v890, 32
    %v893 = vpop.permute.xlu0 %892
    %vm895 = vcmask 257024
    %896 = vst.msk [vmem:[#allocation15] sm:$0xf] %vm895, %v893
    %v897 = vld [vmem:[#allocation2] sm:$0xff]
    %v898 = vld [vmem:[#allocation2 + $0x8] sm:$0xff]
    %v899 = vadd.f32 %v246, %v897
    %v900 = vadd.f32 %v247, %v898
    %v901 = vld [vmem:[#allocation12] sm:$0xff]
    %v902 = vld [vmem:[#allocation12 + $0x8] sm:$0xff]
    %v903 = vld [vmem:[#allocation12 + $0x10] sm:$0xff]
    %v904 = vld [vmem:[#allocation12 + $0x18] sm:$0xff]
    %v905 = vld [vmem:[%s9] sm:$0x1]
    %v907 = vperm.slane %v905, 0
    %v910 = vsel %vm180, %v899, 0
    %v913 = vsel %vm180, %v900, 0
    %915 = vmatpush.msra.mxu0 0.0
    %916 = vmatpush.msra.mxu0 0.0
    %917 = vmatpush.msra.mxu0 0.0
    %918 = vmatpush.msra.mxu0 0.0
    %919 = vmatpush.msra.mxu0 0.0
    %920 = vmatpush.msra.mxu0 0.0
    %921 = vmatpush.msra.mxu0 0.0
    %922 = vmatpush.msra.mxu0 0.0
    %923 = vmatpush.msra.mxu0 0.0
    %924 = vmatpush.msra.mxu0 0.0
    %925 = vmatpush.msra.mxu0 0.0
    %926 = vmatpush.msra.mxu0 0.0
    %927 = vmatpush.msra.mxu0 %v904
    %928 = vmatpush.msra.mxu0 %v903
    %929 = vmatpush.msra.mxu0 %v902
    %930 = vmatpush.msra.mxu0 %v901
    %931 = vmatmul.f32.gmra.mxu0 %v910
    %v932 = vpop.f32.mrf.mxu0
    %v933 = vadd.f32 %v907, %v932
    %934 = vmatmul.f32.gmra.mxu0 %v913
    %v935 = vpop.f32.mrf.mxu0
    %v936 = vadd.f32 %v907, %v935
    %937 = vdwg.mxu0
    %v938 = vld [vmem:[%s10] sm:$0x1]
    %v939 = vld [vmem:[%s11] sm:$0x1]
    %v940 = vsel %vm180, %v933, 0.0
    %941 = vadd.xlane.f32.xlu0 %v940
    %v942 = vpop.xlane.xlu0 %941
    %v943 = vsel %vm180, %v936, 0.0
    %944 = vadd.xlane.f32.xlu0 %v943
    %v945 = vpop.xlane.xlu0 %944
    %v946 = vmul.f32 %v942, %v193
    %v947 = vmul.f32 %v945, %v193
    %v948 = vsub.f32 %v933, %v946
    %v949 = vsub.f32 %v936, %v947
    %v950 = vmul.f32 %v948, %v948
    %v951 = vmul.f32 %v949, %v949
    %v952 = vsel %vm180, %v950, 0.0
    %953 = vadd.xlane.f32.xlu0 %v952
    %v954 = vpop.xlane.xlu0 %953
    %v955 = vsel %vm180, %v951, 0.0
    %956 = vadd.xlane.f32.xlu0 %v955
    %v957 = vpop.xlane.xlu0 %956
    %v958 = vmul.f32 %v954, %v193
    %v959 = vmul.f32 %v957, %v193
    %v960 = vadd.f32 %v958, 1e-05
    %v961 = vadd.f32 %v959, 1e-05
    %v962 = vrsqrt.pop %v960
    %v963 = vmul.f32 %v962, %v960
    %v964 = vmul.f32 %v963, %v962
    %v965 = vmul.f32 0.5, %v964
    %v966 = vsub.f32 1.5, %v965
    %v967 = vmul.f32 %v962, %v966
    %vm968 = vweird.f32 %v960
    %vm969 = vweird.f32 %v962
    %vm970 = vmor %vm968, %vm969
    %v971 = vsel %vm970, %v962, %v967
    %v972 = vrsqrt.pop %v961
    %v973 = vmul.f32 %v972, %v961
    %v974 = vmul.f32 %v973, %v972
    %v975 = vmul.f32 0.5, %v974
    %v976 = vsub.f32 1.5, %v975
    %v977 = vmul.f32 %v972, %v976
    %vm978 = vweird.f32 %v961
    %vm979 = vweird.f32 %v972
    %vm980 = vmor %vm978, %vm979
    %v981 = vsel %vm980, %v972, %v977
    %v982 = vmul.f32 %v948, %v971
    %v983 = vmul.f32 %v949, %v981
    %v985 = vperm.slane %v938, 0
    %v987 = vmul.f32 %v982, %v985
    %v988 = vmul.f32 %v983, %v985
    %v990 = vperm.slane %v939, 0
    %v992 = vadd.f32 %v987, %v990
    %v993 = vadd.f32 %v988, %v990
    %vm994 = vcmp.ge.f32.partialorder %v992, 0.0
    %vm995 = vcmp.ge.f32.partialorder %v993, 0.0
    %v996 = vmul.f32 %v992, 0.01
    %v997 = vmul.f32 %v993, 0.01
    %v998 = vsel %vm994, %v992, %v996
    %v999 = vsel %vm995, %v993, %v997
    %1000 = vst.msk [vmem:[#allocation14] sm:$0xff] %vm180, %v998
    %1001 = vst.msk [vmem:[#allocation14 + $0x8] sm:$0xff] %vm180, %v999
    // Predicated region
    $region78: #{tpu_custom_call.1} parent=1 // pred_check
      _
    $region79: #{tpu_custom_call.1} parent=1 // pred_check_branch
      %1003 = sbr.rel (0) target = $region81
    $region80: #{tpu_custom_call.1} parent=1 // pred_region
      %1005 = vsyncadd [#allocation5], 0
      %s1006 = sshll.u32 [#allocation14], 4
      %s1007 = int_to_ptr.vmem [resolvable:$true] %s1006
      %s1008 = sshll.u32 %s13, 4
      %s1009 = int_to_ptr.hbm [resolvable:$true] %s1008
      %1014 = dma.vmem_to_hbm [thread:$0]  %s1007, 256, %s1009, [#allocation5], 128, 128, 8
    $region81: #{tpu_custom_call.1} parent=1 // pred_fallthru
      _
    // Predicated region
    $region82: #{tpu_custom_call.1} parent=1 // pred_check
      _
    $region83: #{tpu_custom_call.1} parent=1 // pred_check_branch
      %1016 = sbr.rel (0) target = $region85
    $region84: #{tpu_custom_call.1} parent=1 // pred_region
      %1018 = vsyncadd [#allocation16], 0
      %s1020 = sshll.u32 [#allocation15], 4
      %s1021 = int_to_ptr.vmem [resolvable:$true] %s1020
      %s1022 = sshll.u32 %s14, 4
      %s1023 = int_to_ptr.hbm [resolvable:$true] %s1022
      %1025 = dma.vmem_to_hbm [thread:$0]  %s1021, 64, %s1023, [#allocation16]
    $region85: #{tpu_custom_call.1} parent=1 // pred_fallthru
      _
    // Predicated region
    $region86: #{tpu_custom_call.1} parent=1 // pred_check
      _
    $region87: #{tpu_custom_call.1} parent=1 // pred_check_branch
      %1027 = sbr.rel (0) target = $region89
    $region88: #{tpu_custom_call.1} parent=1 // pred_region
      %1029 = dma.done [#allocation5], 256
    $region89: #{tpu_custom_call.1} parent=1 // pred_fallthru
      _
    // Predicated region
    $region90: #{tpu_custom_call.1} parent=1 // pred_check
      _
    $region91: #{tpu_custom_call.1} parent=1 // pred_check_branch
      %1031 = sbr.rel (0) target = $region93
    $region92: #{tpu_custom_call.1} parent=1 // pred_region
      %1033 = dma.done [#allocation16], 64
    $region93: #{tpu_custom_call.1} parent=1 // pred_fallthru
      _
    %1034 = vsyncpa [#allocation4], 1
    %1035 = vsyncpa [#allocation7], 1
    %1036 = vsyncpa [#allocation10], 1
    %1037 = vsyncpa [#allocation13], 1
    %1038 = vsyncpa [#allocation5], 1
    %1039 = vsyncpa [#allocation16], 1

</llo_original>
